<compile_context>
chip_gen: v6e
topology: v6e:2x2x1
jax: 0.10.0
libtpu: 0.0.40
codegen_flags: <defaults>
</compile_context>

<pallas_src>
import functools

import jax
import jax.numpy as jnp
from jax.experimental import pallas as pl
from jax.experimental.pallas import tpu as pltpu

LANE = 128


# ------------------------------ small helpers -------------------------------

def _round_up(x, m):
    return (x + m - 1) // m * m


def _pad2(x, rows, cols):
    return jnp.pad(x, ((0, rows - x.shape[0]), (0, cols - x.shape[1])))


def _fit_tile(requested, n_pad):
    """Largest multiple of 128 that divides n_pad and is <= requested."""
    t = min(max(requested, LANE), n_pad)
    t -= t % LANE
    while n_pad % t:
        t -= LANE
    return t


def _vmem_budget_bytes():
    """Per-generation scoped-VMEM budget (headroom below physical capacity)."""
    try:
        cap = pltpu.get_tpu_info().vmem_capacity_bytes
    except Exception:
        cap = 64 * 1024 * 1024            # conservative (v7x physical VMEM)
    return int(cap) * 3 // 4              # ~48 MiB on v7x, ~96 MiB on v5e/v6e


def _pick_mode(n_pad, c, g_pad, tile_m, budget):
    # Fully fused: A + activations + f32 temps all resident.
    fused_bytes = (n_pad * n_pad * 2 + 2 * n_pad * c * 2 + 4 * n_pad * c * 4
                   + g_pad * n_pad * 2 + 4 * c * c * 2)
    if fused_bytes <= int(0.7 * budget):
        return "fused"
    # Row-slab: double-buffered A row slab + resident H + out tiles.
    rowslab_bytes = (2 * tile_m * n_pad * 2 + 2 * n_pad * c * 2
                     + 2 * tile_m * c * 4 + 2 * tile_m * c * 2 + 2 * c * c * 2)
    if rowslab_bytes <= int(0.9 * budget):
        return "rowslab"
    return "ktiled"


def _ktiled_h_fits(n_pad, cin, hout, tile_m, tile_k, budget):
    need = (2 * tile_m * tile_k * 2 + 2 * n_pad * cin * 2 + tile_m * cin * 4
            + 2 * cin * hout * 2 + 2 * tile_m * hout * 2)
    return need <= int(0.9 * budget)


# ------------------------------ Pallas kernels ------------------------------

def gcn_fused_kernel(a_ref, x_ref, w1_ref, b1_ref, w2_ref, b2_ref,
                     w3_ref, b3_ref, p_ref, wl_ref, bl_ref, out_ref):
    """Whole forward in one invocation; A_hat is DMA'd into VMEM exactly once
    and reused by all three layers (small/medium graphs)."""
    a = a_ref[...]

    def layer(h, w_ref, b_ref, relu):
        s = jnp.dot(a, h, preferred_element_type=jnp.float32)
        s = jnp.dot(s.astype(jnp.bfloat16), w_ref[...],
                    preferred_element_type=jnp.float32) + b_ref[...]
        if relu:
            s = jnp.maximum(s, 0.0)
        return s.astype(jnp.bfloat16)

    h = layer(x_ref[...], w1_ref, b1_ref, True)
    h = layer(h, w2_ref, b2_ref, True)
    h = layer(h, w3_ref, b3_ref, False)
    pooled = jnp.dot(p_ref[...], h, preferred_element_type=jnp.float32)
    out_ref[...] = jnp.dot(pooled, wl_ref[...],
                           preferred_element_type=jnp.float32) + bl_ref[...]


def conv_rowslab_kernel(a_ref, h_ref, w_ref, b_ref, out_ref, *, apply_relu):
    """One row tile of relu?((A[i,:] @ H) @ W + b); H fully VMEM-resident."""
    s = jnp.dot(a_ref[...], h_ref[...], preferred_element_type=jnp.float32)
    s = jnp.dot(s.astype(jnp.bfloat16), w_ref[...],
                preferred_element_type=jnp.float32) + b_ref[...]
    if apply_relu:
        s = jnp.maximum(s, 0.0)
    out_ref[...] = s.astype(out_ref.dtype)


def conv_ktiled_kernel(a_ref, h_ref, w_ref, b_ref, out_ref, acc_ref, *,
                       apply_relu, h_resident):
    """(row tile i, K tile k) step: acc += A[i,k] @ H[k]; project at last k."""
    k = pl.program_id(1)

    @pl.when(k == 0)
    def _init():
        acc_ref[...] = jnp.zeros_like(acc_ref)

    if h_resident:
        tk = a_ref.shape[1]
        h_blk = h_ref[pl.ds(pl.multiple_of(k * tk, tk), tk), :]
    else:
        h_blk = h_ref[...]
    acc_ref[...] += jnp.dot(a_ref[...], h_blk,
                            preferred_element_type=jnp.float32)

    @pl.when(k == pl.num_programs(1) - 1)
    def _finalize():
        s = jnp.dot(acc_ref[...].astype(jnp.bfloat16), w_ref[...],
                    preferred_element_type=jnp.float32) + b_ref[...]
        if apply_relu:
            s = jnp.maximum(s, 0.0)
        out_ref[...] = s.astype(out_ref.dtype)


def pool_linear_kernel(p_ref, h_ref, wl_ref, bl_ref, out_ref, acc_ref):
    """out = (P @ H) @ Wl + bl, with the P@H reduction tiled over N."""
    k = pl.program_id(0)

    @pl.when(k == 0)
    def _init():
        acc_ref[...] = jnp.zeros_like(acc_ref)

    acc_ref[...] += jnp.dot(p_ref[...], h_ref[...],
                            preferred_element_type=jnp.float32)

    @pl.when(k == pl.num_programs(0) - 1)
    def _finalize():
        out_ref[...] = jnp.dot(acc_ref[...], wl_ref[...],
                               preferred_element_type=jnp.float32) + bl_ref[...]


# ------------------------------ call wrappers --------------------------------

def gcn_fused(a_p, x_p, pool_p, params_p, *, vmem_limit):
    w1, b1, w2, b2, w3, b3, wl, bl = params_p
    n = a_p.shape[0]
    c = max(x_p.shape[1], w1.shape[1])
    g_pad = pool_p.shape[0]
    flops = 3 * (2 * n * n * c + 2 * n * c * c) + 2 * g_pad * n * c
    bytes_accessed = int(a_p.size * 2 + x_p.size * 2 + pool_p.size * 2
                         + sum(p.size * p.dtype.itemsize for p in params_p)
                         + g_pad * LANE * 4)
    return pl.pallas_call(
        gcn_fused_kernel,
        out_shape=jax.ShapeDtypeStruct((g_pad, LANE), jnp.float32),
        compiler_params=pltpu.CompilerParams(vmem_limit_bytes=vmem_limit),
        cost_estimate=pl.CostEstimate(flops=flops, transcendentals=0,
                                      bytes_accessed=bytes_accessed),
    )(a_p, x_p, w1, b1, w2, b2, w3, b3, pool_p, wl, bl)


def gcn_conv_rowslab(a_p, h_p, w_p, b_p, *, apply_relu, tile_m, vmem_limit):
    n = a_p.shape[0]
    cin = h_p.shape[1]
    hout = w_p.shape[1]
    flops = 2 * n * n * cin + 2 * n * cin * hout
    bytes_accessed = int(a_p.size * 2 + h_p.size * 2 + w_p.size * 2
                         + b_p.size * 4 + n * hout * 2)
    return pl.pallas_call(
        functools.partial(conv_rowslab_kernel, apply_relu=apply_relu),
        out_shape=jax.ShapeDtypeStruct((n, hout), jnp.bfloat16),
        grid=(n // tile_m,),
        in_specs=[
            pl.BlockSpec((tile_m, n), lambda i: (i, 0)),     # A row slab
            pl.BlockSpec((n, cin), lambda i: (0, 0)),        # H resident (1 DMA)
            pl.BlockSpec((cin, hout), lambda i: (0, 0)),     # W (small)
            pl.BlockSpec((1, hout), lambda i: (0, 0)),       # bias
        ],
        out_specs=pl.BlockSpec((tile_m, hout), lambda i: (i, 0)),
        compiler_params=pltpu.CompilerParams(
            dimension_semantics=("parallel",),
            vmem_limit_bytes=vmem_limit),
        cost_estimate=pl.CostEstimate(flops=flops, transcendentals=0,
                                      bytes_accessed=bytes_accessed),
    )(a_p, h_p, w_p, b_p)


def gcn_conv_ktiled(a_p, h_p, w_p, b_p, *, apply_relu, tile_m, tile_k,
                    h_resident, vmem_limit):
    n = a_p.shape[0]
    cin = h_p.shape[1]
    hout = w_p.shape[1]
    grid = (n // tile_m, n // tile_k)
    if h_resident:
        h_spec = pl.BlockSpec((n, cin), lambda i, k: (0, 0))
        h_bytes = n * cin * 2
    else:
        h_spec = pl.BlockSpec((tile_k, cin), lambda i, k: (k, 0))
        h_bytes = (n // tile_m) * n * cin * 2       # re-streamed per row tile
    flops = 2 * n * n * cin + 2 * n * cin * hout
    bytes_accessed = int(a_p.size * 2 + h_bytes + w_p.size * 2
                         + b_p.size * 4 + n * hout * 2)
    return pl.pallas_call(
        functools.partial(conv_ktiled_kernel, apply_relu=apply_relu,
                          h_resident=h_resident),
        out_shape=jax.ShapeDtypeStruct((n, hout), jnp.bfloat16),
        grid=grid,
        in_specs=[
            pl.BlockSpec((tile_m, tile_k), lambda i, k: (i, k)),   # A tile
            h_spec,                                                # H
            pl.BlockSpec((cin, hout), lambda i, k: (0, 0)),        # W
            pl.BlockSpec((1, hout), lambda i, k: (0, 0)),          # bias
        ],
        out_specs=pl.BlockSpec((tile_m, hout), lambda i, k: (i, 0)),
        scratch_shapes=[pltpu.VMEM((tile_m, cin), jnp.float32)],
        compiler_params=pltpu.CompilerParams(
            dimension_semantics=("parallel", "arbitrary"),
            vmem_limit_bytes=vmem_limit),
        cost_estimate=pl.CostEstimate(flops=flops, transcendentals=0,
                                      bytes_accessed=bytes_accessed),
    )(a_p, h_p, w_p, b_p)


def pool_linear(pool_p, h_p, wl_p, bl_p, *, tile_k, vmem_limit):
    g_pad, n = pool_p.shape
    h_pad = h_p.shape[1]
    out_cols = wl_p.shape[1]
    return pl.pallas_call(
        pool_linear_kernel,
        out_shape=jax.ShapeDtypeStruct((g_pad, out_cols), jnp.float32),
        grid=(n // tile_k,),
        in_specs=[
            pl.BlockSpec((g_pad, tile_k), lambda k: (0, k)),   # P tile (bf16)
            pl.BlockSpec((tile_k, h_pad), lambda k: (k, 0)),   # H tile (bf16)
            pl.BlockSpec((h_pad, out_cols), lambda k: (0, 0)),
            pl.BlockSpec((1, out_cols), lambda k: (0, 0)),
        ],
        out_specs=pl.BlockSpec((g_pad, out_cols), lambda k: (0, 0)),
        scratch_shapes=[pltpu.VMEM((g_pad, h_pad), jnp.float32)],
        compiler_params=pltpu.CompilerParams(
            dimension_semantics=("arbitrary",),
            vmem_limit_bytes=vmem_limit),
    )(pool_p, h_p, wl_p, bl_p)


# ------------------------------ forward pass --------------------------------

def prepare_inputs(a_hat, x, pool, params):
    """Pad to lane-dense shapes + cast the matmul operands to bf16 ONCE.

    Hoisted out of the per-forward path so the O(N^2) pad/cast of A_hat is not
    re-done every call (it is reused by all three layers and across calls)."""
    w1, b1, w2, b2, w3, b3, wl, bl = params
    n, f_in = x.shape
    g = pool.shape[0]
    hidden = w1.shape[1]

    n_pad = _round_up(n, LANE)
    f_pad = _round_up(f_in, LANE)
    h_pad = _round_up(hidden, LANE)
    g_pad = _round_up(g, 8)

    a_p = _pad2(a_hat, n_pad, n_pad).astype(jnp.bfloat16)
    x_p = _pad2(x, n_pad, f_pad).astype(jnp.bfloat16)
    pool_p = _pad2(pool, g_pad, n_pad).astype(jnp.bfloat16)
    params_p = (
        _pad2(w1, f_pad, h_pad).astype(jnp.bfloat16), _pad2(b1, 1, h_pad),
        _pad2(w2, h_pad, h_pad).astype(jnp.bfloat16), _pad2(b2, 1, h_pad),
        _pad2(w3, h_pad, h_pad).astype(jnp.bfloat16), _pad2(b3, 1, h_pad),
        _pad2(wl, h_pad, LANE), _pad2(bl, 1, LANE),
    )
    return a_p, x_p, pool_p, params_p


@functools.partial(
    jax.jit,
    static_argnames=("num_graphs", "mode", "tile_m", "tile_k", "h_resident",
                     "vmem_limit"))
def _forward_impl(a_p, x_p, pool_p, w1, b1, w2, b2, w3, b3, wl, bl, *,
                  num_graphs, mode, tile_m, tile_k, h_resident, vmem_limit):
    params_p = (w1, b1, w2, b2, w3, b3, wl, bl)
    if mode == "fused":
        out = gcn_fused(a_p, x_p, pool_p, params_p, vmem_limit=vmem_limit)
    else:
        if mode == "rowslab":
            conv = functools.partial(gcn_conv_rowslab, tile_m=tile_m,
                                     vmem_limit=vmem_limit)
        else:
            conv = functools.partial(gcn_conv_ktiled, tile_m=tile_m,
                                     tile_k=tile_k, h_resident=h_resident,
                                     vmem_limit=vmem_limit)
        h1 = conv(a_p, x_p, w1, b1, apply_relu=True)
        h2 = conv(a_p, h1, w2, b2, apply_relu=True)
        h3 = conv(a_p, h2, w3, b3, apply_relu=False)
        out = pool_linear(pool_p, h3, wl, bl, tile_k=tile_k,
                          vmem_limit=vmem_limit)
    return out[:num_graphs, :1]


def gcn_forward(prepared, *, num_graphs, mode="auto", tile_m=256, tile_k=1024,
                h_resident=None):
    """Full GCN forward on pre-padded/bf16 inputs.  Picks the conv strategy
    from the per-generation VMEM budget unless `mode` is forced."""
    a_p, x_p, pool_p, params_p = prepared
    n_pad = a_p.shape[0]
    cin = max(x_p.shape[1], params_p[0].shape[1])
    hout = params_p[0].shape[1]
    g_pad = pool_p.shape[0]
    tile_m = _fit_tile(tile_m, n_pad)
    tile_k = _fit_tile(tile_k, n_pad)
    budget = _vmem_budget_bytes()

    if mode == "auto":
        mode = _pick_mode(n_pad, cin, g_pad, tile_m, budget)
    if mode != "ktiled":
        h_resident = False
    elif h_resident is None:
        h_resident = _ktiled_h_fits(n_pad, cin, hout, tile_m, tile_k, budget)

    return _forward_impl(a_p, x_p, pool_p, *params_p, num_graphs=num_graphs,
                         mode=mode, tile_m=tile_m, tile_k=tile_k,
                         h_resident=bool(h_resident), vmem_limit=budget)


# ------------------------- plain-JAX glue / setup --------------------------

def build_norm_adj(edge_index, num_nodes):
    """A_hat = D^{-1/2} (A + I) D^{-1/2} (dense)."""
    src, dst = edge_index[0], edge_index[1]
    a = jnp.zeros((num_nodes, num_nodes), jnp.float32)
    a = a.at[src, dst].set(1.0)
    a = a + jnp.eye(num_nodes, dtype=jnp.float32)   # self loops
    deg = a.sum(axis=1)
    dinv = jnp.where(deg > 0, 1.0 / jnp.sqrt(deg), 0.0)
    return dinv[:, None] * a * dinv[None, :]


def build_pool_matrix(batch, num_graphs):
    """P[g, n] = 1/|graph g| if batch[n] == g else 0  (mean pooling)."""
    onehot = (batch[None, :] == jnp.arange(num_graphs)[:, None]).astype(jnp.float32)
    counts = onehot.sum(axis=1, keepdims=True)
    return onehot / jnp.maximum(counts, 1.0)


def init_params(key, in_feats, hidden):
    ks = jax.random.split(key, 5)

    def glorot(k, fan_in, fan_out):
        limit = jnp.sqrt(6.0 / (fan_in + fan_out))
        return jax.random.uniform(k, (fan_in, fan_out), jnp.float32, -limit, limit)

    w1 = glorot(ks[0], in_feats, hidden)
    w2 = glorot(ks[1], hidden, hidden)
    w3 = glorot(ks[2], hidden, hidden)
    wl = glorot(ks[3], hidden, 1)
    b1 = jnp.zeros((1, hidden), jnp.float32)
    b2 = jnp.zeros((1, hidden), jnp.float32)
    b3 = jnp.zeros((1, hidden), jnp.float32)
    bl = jax.random.uniform(ks[4], (1, 1), jnp.float32, -0.1, 0.1)
    return w1, b1, w2, b2, w3, b3, wl, bl


def reference_forward_f32(a_hat, x, params, pool):
    """Original (f32) GCN semantics."""
    w1, b1, w2, b2, w3, b3, wl, bl = params
    h = jnp.maximum(a_hat @ (x @ w1) + b1, 0.0)
    h = jnp.maximum(a_hat @ (h @ w2) + b2, 0.0)
    h = a_hat @ (h @ w3) + b3
    return (pool @ h) @ wl + bl


def mirror_reference(a_hat, x, params, pool):
    """Plain-JAX reference with the SAME dtype/op ordering as the kernels."""
    w1, b1, w2, b2, w3, b3, wl, bl = params
    bf = jnp.bfloat16
    a = a_hat.astype(bf)

    def layer(h, w, b, relu):
        s = jnp.dot(a, h, preferred_element_type=jnp.float32)
        s = jnp.dot(s.astype(bf), w.astype(bf),
                    preferred_element_type=jnp.float32) + b
        if relu:
            s = jnp.maximum(s, 0.0)
        return s.astype(bf)

    h = layer(x.astype(bf), w1, b1, True)
    h = layer(h, w2, b2, True)
    h = layer(h, w3, b3, False)
    pooled = jnp.dot(pool.astype(bf), h, preferred_element_type=jnp.float32)
    return jnp.dot(pooled, wl, preferred_element_type=jnp.float32) + bl


if __name__ == "__main__":
    key = jax.random.PRNGKey(0)
    k_x, k_p = jax.random.split(key)

    # Small synthetic batch: 2 ring graphs of 80 nodes each, 9 node features.
    G = 2
    nodes_per_graph = 80
    N = G * nodes_per_graph
    F_IN, HIDDEN = 9, 32

    src, dst = [], []
    for g in range(G):
        off = g * nodes_per_graph
        for i in range(nodes_per_graph):
            u = off + i
            v = off + (i + 1) % nodes_per_graph
            src += [u, v]
            dst += [v, u]
    edge_index = jnp.array([src, dst], dtype=jnp.int32)                  # (2, 320)
    batch = jnp.repeat(jnp.arange(G, dtype=jnp.int32), nodes_per_graph)  # (160,)

    x = jax.random.normal(k_x, (N, F_IN), jnp.float32)                   # data.x
    a_hat = build_norm_adj(edge_index, N)
    pool = build_pool_matrix(batch, G)
    params = init_params(k_p, F_IN, HIDDEN)

    # Pad + bf16 cast ONCE (hoisted out of the forward path, reused below).
    prepared = prepare_inputs(a_hat, x, pool, params)
    prepared = jax.tree_util.tree_map(jax.block_until_ready, prepared)

    # tile 128 so the small demo exercises real multi-step grids; use the
    # larger defaults (tile_m=256, tile_k=1024) for big N on v6e/v7x.
    runs = {
        "auto": gcn_forward(prepared, num_graphs=G, mode="auto",
                            tile_m=128, tile_k=128),
        "rowslab": gcn_forward(prepared, num_graphs=G, mode="rowslab",
                               tile_m=128, tile_k=128),
        "ktiled_resident_h": gcn_forward(prepared, num_graphs=G, mode="ktiled",
                                         tile_m=128, tile_k=128,
                                         h_resident=True),
        "ktiled_streamed_h": gcn_forward(prepared, num_graphs=G, mode="ktiled",
                                         tile_m=128, tile_k=128,
                                         h_resident=False),
    }
    runs = {name: jax.block_until_ready(out) for name, out in runs.items()}

    mirror = mirror_reference(a_hat, x, params, pool)      # same numerics path
    ref32 = reference_forward_f32(a_hat, x, params, pool)  # original f32 math
    for name, out in runs.items():
        assert out.shape == (G, 1), (name, out.shape)
        assert jnp.allclose(out, mirror, atol=2e-2, rtol=2e-2), (name, out, mirror)
        assert jnp.allclose(out, ref32, atol=1e-1, rtol=1e-1), (name, out, ref32)

    print("KERNEL_OK")
</pallas_src>

<mosaic_0001>
module attributes {stable_mosaic.version = 11 : i64} {
  func.func @gcn_fused_kernel(%arg0: memref<256x256xbf16, #tpu.memory_space<vmem>>, %arg1: memref<256x128xbf16, #tpu.memory_space<vmem>>, %arg2: memref<128x128xbf16, #tpu.memory_space<vmem>>, %arg3: memref<1x128xf32, #tpu.memory_space<vmem>>, %arg4: memref<128x128xbf16, #tpu.memory_space<vmem>>, %arg5: memref<1x128xf32, #tpu.memory_space<vmem>>, %arg6: memref<128x128xbf16, #tpu.memory_space<vmem>>, %arg7: memref<1x128xf32, #tpu.memory_space<vmem>>, %arg8: memref<8x256xbf16, #tpu.memory_space<vmem>>, %arg9: memref<128x128xf32, #tpu.memory_space<vmem>>, %arg10: memref<1x128xf32, #tpu.memory_space<vmem>>, %arg11: memref<8x128xf32, #tpu.memory_space<vmem>>) attributes {dimension_semantics = [], scalar_prefetch = 0 : i64, scratch_operands = 0 : i64, tpu.core_type = #tpu.core_type<tc>} {
    %c0 = arith.constant 0 : index
    %c0_0 = arith.constant 0 : index
    %0 = vector.load %arg0[%c0, %c0_0] : memref<256x256xbf16, #tpu.memory_space<vmem>>, vector<256x256xbf16>
    %c0_1 = arith.constant 0 : index
    %c0_2 = arith.constant 0 : index
    %1 = vector.load %arg1[%c0_1, %c0_2] : memref<256x128xbf16, #tpu.memory_space<vmem>>, vector<256x128xbf16>
    %cst = arith.constant dense<0.000000e+00> : vector<256x128xf32>
    %2 = tpu.matmul %0, %1, %cst {dimension_numbers = #tpu.dot_dimension_numbers<[1], [0], [0], [1], [0, 0, 1, 1], [], []>} : vector<256x256xbf16>, vector<256x128xbf16>, vector<256x128xf32> -> vector<256x128xf32>
    %3 = arith.truncf %2 : vector<256x128xf32> to vector<256x128xbf16>
    %c0_3 = arith.constant 0 : index
    %c0_4 = arith.constant 0 : index
    %4 = vector.load %arg2[%c0_3, %c0_4] : memref<128x128xbf16, #tpu.memory_space<vmem>>, vector<128x128xbf16>
    %cst_5 = arith.constant dense<0.000000e+00> : vector<256x128xf32>
    %5 = tpu.matmul %3, %4, %cst_5 {dimension_numbers = #tpu.dot_dimension_numbers<[1], [0], [0], [1], [0, 0, 1, 1], [], []>} : vector<256x128xbf16>, vector<128x128xbf16>, vector<256x128xf32> -> vector<256x128xf32>
    %c0_6 = arith.constant 0 : index
    %c0_7 = arith.constant 0 : index
    %6 = vector.load %arg3[%c0_6, %c0_7] : memref<1x128xf32, #tpu.memory_space<vmem>>, vector<1x128xf32>
    %7 = vector.broadcast %6 : vector<1x128xf32> to vector<256x128xf32>
    %8 = arith.addf %5, %7 : vector<256x128xf32>
    %cst_8 = arith.constant 0.000000e+00 : f32
    %9 = vector.broadcast %cst_8 : f32 to vector<256x128xf32>
    %10 = arith.maximumf %8, %9 : vector<256x128xf32>
    %11 = arith.truncf %10 : vector<256x128xf32> to vector<256x128xbf16>
    %cst_9 = arith.constant dense<0.000000e+00> : vector<256x128xf32>
    %12 = tpu.matmul %0, %11, %cst_9 {dimension_numbers = #tpu.dot_dimension_numbers<[1], [0], [0], [1], [0, 0, 1, 1], [], []>} : vector<256x256xbf16>, vector<256x128xbf16>, vector<256x128xf32> -> vector<256x128xf32>
    %13 = arith.truncf %12 : vector<256x128xf32> to vector<256x128xbf16>
    %c0_10 = arith.constant 0 : index
    %c0_11 = arith.constant 0 : index
    %14 = vector.load %arg4[%c0_10, %c0_11] : memref<128x128xbf16, #tpu.memory_space<vmem>>, vector<128x128xbf16>
    %cst_12 = arith.constant dense<0.000000e+00> : vector<256x128xf32>
    %15 = tpu.matmul %13, %14, %cst_12 {dimension_numbers = #tpu.dot_dimension_numbers<[1], [0], [0], [1], [0, 0, 1, 1], [], []>} : vector<256x128xbf16>, vector<128x128xbf16>, vector<256x128xf32> -> vector<256x128xf32>
    %c0_13 = arith.constant 0 : index
    %c0_14 = arith.constant 0 : index
    %16 = vector.load %arg5[%c0_13, %c0_14] : memref<1x128xf32, #tpu.memory_space<vmem>>, vector<1x128xf32>
    %17 = vector.broadcast %16 : vector<1x128xf32> to vector<256x128xf32>
    %18 = arith.addf %15, %17 : vector<256x128xf32>
    %cst_15 = arith.constant 0.000000e+00 : f32
    %19 = vector.broadcast %cst_15 : f32 to vector<256x128xf32>
    %20 = arith.maximumf %18, %19 : vector<256x128xf32>
    %21 = arith.truncf %20 : vector<256x128xf32> to vector<256x128xbf16>
    %cst_16 = arith.constant dense<0.000000e+00> : vector<256x128xf32>
    %22 = tpu.matmul %0, %21, %cst_16 {dimension_numbers = #tpu.dot_dimension_numbers<[1], [0], [0], [1], [0, 0, 1, 1], [], []>} : vector<256x256xbf16>, vector<256x128xbf16>, vector<256x128xf32> -> vector<256x128xf32>
    %23 = arith.truncf %22 : vector<256x128xf32> to vector<256x128xbf16>
    %c0_17 = arith.constant 0 : index
    %c0_18 = arith.constant 0 : index
    %24 = vector.load %arg6[%c0_17, %c0_18] : memref<128x128xbf16, #tpu.memory_space<vmem>>, vector<128x128xbf16>
    %cst_19 = arith.constant dense<0.000000e+00> : vector<256x128xf32>
    %25 = tpu.matmul %23, %24, %cst_19 {dimension_numbers = #tpu.dot_dimension_numbers<[1], [0], [0], [1], [0, 0, 1, 1], [], []>} : vector<256x128xbf16>, vector<128x128xbf16>, vector<256x128xf32> -> vector<256x128xf32>
    %c0_20 = arith.constant 0 : index
    %c0_21 = arith.constant 0 : index
    %26 = vector.load %arg7[%c0_20, %c0_21] : memref<1x128xf32, #tpu.memory_space<vmem>>, vector<1x128xf32>
    %27 = vector.broadcast %26 : vector<1x128xf32> to vector<256x128xf32>
    %28 = arith.addf %25, %27 : vector<256x128xf32>
    %29 = arith.truncf %28 : vector<256x128xf32> to vector<256x128xbf16>
    %c0_22 = arith.constant 0 : index
    %c0_23 = arith.constant 0 : index
    %30 = vector.load %arg8[%c0_22, %c0_23] : memref<8x256xbf16, #tpu.memory_space<vmem>>, vector<8x256xbf16>
    %cst_24 = arith.constant dense<0.000000e+00> : vector<8x128xf32>
    %31 = tpu.matmul %30, %29, %cst_24 {dimension_numbers = #tpu.dot_dimension_numbers<[1], [0], [0], [1], [0, 0, 1, 1], [], []>} : vector<8x256xbf16>, vector<256x128xbf16>, vector<8x128xf32> -> vector<8x128xf32>
    %c0_25 = arith.constant 0 : index
    %c0_26 = arith.constant 0 : index
    %32 = vector.load %arg9[%c0_25, %c0_26] : memref<128x128xf32, #tpu.memory_space<vmem>>, vector<128x128xf32>
    %cst_27 = arith.constant dense<0.000000e+00> : vector<8x128xf32>
    %33 = tpu.matmul %31, %32, %cst_27 {dimension_numbers = #tpu.dot_dimension_numbers<[1], [0], [0], [1], [0, 0, 1, 1], [], []>} : vector<8x128xf32>, vector<128x128xf32>, vector<8x128xf32> -> vector<8x128xf32>
    %c0_28 = arith.constant 0 : index
    %c0_29 = arith.constant 0 : index
    %34 = vector.load %arg10[%c0_28, %c0_29] : memref<1x128xf32, #tpu.memory_space<vmem>>, vector<1x128xf32>
    %35 = vector.broadcast %34 : vector<1x128xf32> to vector<8x128xf32>
    %36 = arith.addf %33, %35 : vector<8x128xf32>
    %c0_30 = arith.constant 0 : index
    %c0_31 = arith.constant 0 : index
    %37 = vector.load %arg11[%c0_30, %c0_31] : memref<8x128xf32, #tpu.memory_space<vmem>>, vector<8x128xf32>
    tpu.vector_store %arg11[%c0_30, %c0_31], %36 {strides = array<i32>} : memref<8x128xf32, #tpu.memory_space<vmem>>, vector<8x128xf32>,
    return
  }
}

</mosaic_0001>

<llo_original>
// kernel: _forward_impl.1
$region0: #{_forward_impl.1}
  #allocation0 [shape = 'u32[]', space=smem, size = 0x4, offset = 0x4, fixed_abs, tag = 'smem constant byte address 0x4 - core index']
  #allocation1 [shape = 'u32[144,128]{1,0:T(1,128)}', space=vmem, size = 0x12000, scoped, tag = 'internal scratch']
  %s0 = inlined_call_operand.hbm [shape: bf16[256,256], index: 0, kind: input, shape index: {}]
  %s1 = inlined_call_operand.hbm [shape: bf16[256,128], index: 1, kind: input, shape index: {}]
  %s2 = inlined_call_operand.hbm [shape: bf16[128,128], index: 2, kind: input, shape index: {}]
  %s3 = inlined_call_operand.vmem [shape: f32[1,128], index: 3, kind: input, shape index: {}]
  %s4 = inlined_call_operand.hbm [shape: bf16[128,128], index: 4, kind: input, shape index: {}]
  %s5 = inlined_call_operand.vmem [shape: f32[1,128], index: 5, kind: input, shape index: {}]
  %s6 = inlined_call_operand.hbm [shape: bf16[128,128], index: 6, kind: input, shape index: {}]
  %s7 = inlined_call_operand.vmem [shape: f32[1,128], index: 7, kind: input, shape index: {}]
  %s8 = inlined_call_operand.hbm [shape: bf16[8,256], index: 8, kind: input, shape index: {}]
  %s9 = inlined_call_operand.hbm [shape: f32[128,128], index: 9, kind: input, shape index: {}]
  %s10 = inlined_call_operand.vmem [shape: f32[1,128], index: 10, kind: input, shape index: {}]
  %s11 = inlined_call_operand.vmem [shape: f32[8,128], index: 11, kind: output, shape index: {}]
  %s12 = sld [smem:[#allocation0]]
  $region82: #{_forward_impl.1} parent=0
    _
  %s14 = ssub.s32 1, %s12
  %s15 = scalar_select 0, %s14, %s12
  $region1: #{_forward_impl.1} parent=0
    #allocation2 [shape = 'u8[131072]{0}', space=vmem, size = 0x20000, scoped, tag = 'input window, operand 0, single buffered']
    #allocation3 [shape = 's32[1]{0}', space=sflag, size = 0x4, scoped, tag = 'scoped memory for _forward_impl.1']
    #allocation4 [shape = 'u8[65536]{0}', space=vmem, size = 0x10000, scoped, tag = 'input window, operand 1, single buffered']
    #allocation5 [shape = 's32[1]{0}', space=sflag, size = 0x4, scoped, tag = 'scoped memory for _forward_impl.1']
    #allocation6 [shape = 'u8[32768]{0}', space=vmem, size = 0x8000, scoped, tag = 'input window, operand 2, single buffered']
    #allocation7 [shape = 'u8[32768]{0}', space=vmem, size = 0x8000, scoped, tag = 'input window, operand 4, single buffered']
    #allocation8 [shape = 's32[1]{0}', space=sflag, size = 0x4, scoped, tag = 'scoped memory for _forward_impl.1']
    #allocation9 [shape = 'u8[32768]{0}', space=vmem, size = 0x8000, scoped, tag = 'input window, operand 6, single buffered']
    #allocation10 [shape = 'u8[4096]{0}', space=vmem, size = 0x1000, scoped, tag = 'input window, operand 8, single buffered']
    #allocation11 [shape = 's32[1]{0}', space=sflag, size = 0x4, scoped, tag = 'scoped memory for _forward_impl.1']
    #allocation12 [shape = 'u8[65536]{0}', space=vmem, size = 0x10000, scoped, tag = 'input window, operand 9, single buffered']
    %16 = vsyncpa [#allocation3], 0
    %17 = vsyncpa [#allocation5], 0
    %18 = vsyncpa [#allocation8], 0
    %19 = vsyncpa [#allocation11], 0
    // Predicated region
    $region2: #{_forward_impl.1} parent=1 // pred_check
      _
    $region3: #{_forward_impl.1} parent=1 // pred_check_branch
      %21 = sbr.rel (0) target = $region5
    $region4: #{_forward_impl.1} parent=1 // pred_region
      %s23 = ssub.s32 4096, 4096
      %24 = vsyncadd [#allocation3], %s23
      %s25 = sshll.u32 [#allocation2], 4
      %s26 = int_to_ptr.vmem [resolvable:$true] %s25
      %31 = dma.hbm_to_vmem [thread:$0]  %s0, 4096, %s26, [#allocation3], 128, 128, 8
    $region5: #{_forward_impl.1} parent=1 // pred_fallthru
      _
    // Predicated region
    $region6: #{_forward_impl.1} parent=1 // pred_check
      _
    $region7: #{_forward_impl.1} parent=1 // pred_check_branch
      %33 = sbr.rel (0) target = $region9
    $region8: #{_forward_impl.1} parent=1 // pred_region
      %s35 = ssub.s32 2048, 2048
      %36 = vsyncadd [#allocation5], %s35
      %s37 = sshll.u32 [#allocation4], 4
      %s38 = int_to_ptr.vmem [resolvable:$true] %s37
      %43 = dma.hbm_to_vmem [thread:$0]  %s1, 2048, %s38, [#allocation5], 64, 64, 4
    $region9: #{_forward_impl.1} parent=1 // pred_fallthru
      _
    // Predicated region
    $region10: #{_forward_impl.1} parent=1 // pred_check
      _
    $region11: #{_forward_impl.1} parent=1 // pred_check_branch
      %45 = sbr.rel (0) target = $region13
    $region12: #{_forward_impl.1} parent=1 // pred_region
      %s47 = ssub.s32 1024, 1024
      %48 = vsyncadd [#allocation5], %s47
      %s49 = sshll.u32 [#allocation6], 4
      %s50 = int_to_ptr.vmem [resolvable:$true] %s49
      %55 = dma.hbm_to_vmem [thread:$0]  %s2, 1024, %s50, [#allocation5], 64, 64, 4
    $region13: #{_forward_impl.1} parent=1 // pred_fallthru
      _
    // Predicated region
    $region14: #{_forward_impl.1} parent=1 // pred_check
      _
    $region15: #{_forward_impl.1} parent=1 // pred_check_branch
      %57 = sbr.rel (0) target = $region17
    $region16: #{_forward_impl.1} parent=1 // pred_region
      _
    $region17: #{_forward_impl.1} parent=1 // pred_fallthru
      _
    // Predicated region
    $region18: #{_forward_impl.1} parent=1 // pred_check
      _
    $region19: #{_forward_impl.1} parent=1 // pred_check_branch
      %59 = sbr.rel (0) target = $region21
    $region20: #{_forward_impl.1} parent=1 // pred_region
      %s61 = ssub.s32 1024, 1024
      %62 = vsyncadd [#allocation8], %s61
      %s63 = sshll.u32 [#allocation7], 4
      %s64 = int_to_ptr.vmem [resolvable:$true] %s63
      %69 = dma.hbm_to_vmem [thread:$0]  %s4, 1024, %s64, [#allocation8], 64, 64, 4
    $region21: #{_forward_impl.1} parent=1 // pred_fallthru
      _
    // Predicated region
    $region22: #{_forward_impl.1} parent=1 // pred_check
      _
    $region23: #{_forward_impl.1} parent=1 // pred_check_branch
      %71 = sbr.rel (0) target = $region25
    $region24: #{_forward_impl.1} parent=1 // pred_region
      _
    $region25: #{_forward_impl.1} parent=1 // pred_fallthru
      _
    // Predicated region
    $region26: #{_forward_impl.1} parent=1 // pred_check
      _
    $region27: #{_forward_impl.1} parent=1 // pred_check_branch
      %73 = sbr.rel (0) target = $region29
    $region28: #{_forward_impl.1} parent=1 // pred_region
      %s75 = ssub.s32 1024, 1024
      %76 = vsyncadd [#allocation8], %s75
      %s77 = sshll.u32 [#allocation9], 4
      %s78 = int_to_ptr.vmem [resolvable:$true] %s77
      %83 = dma.hbm_to_vmem [thread:$0]  %s6, 1024, %s78, [#allocation8], 64, 64, 4
    $region29: #{_forward_impl.1} parent=1 // pred_fallthru
      _
    // Predicated region
    $region30: #{_forward_impl.1} parent=1 // pred_check
      _
    $region31: #{_forward_impl.1} parent=1 // pred_check_branch
      %85 = sbr.rel (0) target = $region33
    $region32: #{_forward_impl.1} parent=1 // pred_region
      _
    $region33: #{_forward_impl.1} parent=1 // pred_fallthru
      _
    // Predicated region
    $region34: #{_forward_impl.1} parent=1 // pred_check
      _
    $region35: #{_forward_impl.1} parent=1 // pred_check_branch
      %87 = sbr.rel (0) target = $region37
    $region36: #{_forward_impl.1} parent=1 // pred_region
      %s89 = ssub.s32 128, 128
      %90 = vsyncadd [#allocation11], %s89
      %s92 = sshll.u32 [#allocation10], 4
      %s93 = int_to_ptr.vmem [resolvable:$true] %s92
      %95 = dma.hbm_to_vmem [thread:$0]  %s8, 128, %s93, [#allocation11]
    $region37: #{_forward_impl.1} parent=1 // pred_fallthru
      _
    // Predicated region
    $region38: #{_forward_impl.1} parent=1 // pred_check
      _
    $region39: #{_forward_impl.1} parent=1 // pred_check_branch
      %97 = sbr.rel (0) target = $region41
    $region40: #{_forward_impl.1} parent=1 // pred_region
      %s99 = ssub.s32 2048, 2048
      %100 = vsyncadd [#allocation11], %s99
      %s101 = sshll.u32 [#allocation12], 4
      %s102 = int_to_ptr.vmem [resolvable:$true] %s101
      %107 = dma.hbm_to_vmem [thread:$0]  %s9, 2048, %s102, [#allocation11], 128, 128, 8
    $region41: #{_forward_impl.1} parent=1 // pred_fallthru
      _
    // Predicated region
    $region42: #{_forward_impl.1} parent=1 // pred_check
      _
    $region43: #{_forward_impl.1} parent=1 // pred_check_branch
      %109 = sbr.rel (0) target = $region45
    $region44: #{_forward_impl.1} parent=1 // pred_region
      _
    $region45: #{_forward_impl.1} parent=1 // pred_fallthru
      _
    // Predicated region
    $region46: #{_forward_impl.1} parent=1 // pred_check
      _
    $region47: #{_forward_impl.1} parent=1 // pred_check_branch
      %111 = sbr.rel (0) target = $region49
    $region48: #{_forward_impl.1} parent=1 // pred_region
      %112 = dma.done [#allocation3], 4096
    $region49: #{_forward_impl.1} parent=1 // pred_fallthru
      _
    // Predicated region
    $region50: #{_forward_impl.1} parent=1 // pred_check
      _
    $region51: #{_forward_impl.1} parent=1 // pred_check_branch
      %114 = sbr.rel (0) target = $region53
    $region52: #{_forward_impl.1} parent=1 // pred_region
      %115 = dma.done [#allocation5], 2048
    $region53: #{_forward_impl.1} parent=1 // pred_fallthru
      _
    // Predicated region
    $region54: #{_forward_impl.1} parent=1 // pred_check
      _
    $region55: #{_forward_impl.1} parent=1 // pred_check_branch
      %117 = sbr.rel (0) target = $region57
    $region56: #{_forward_impl.1} parent=1 // pred_region
      %118 = dma.done [#allocation5], 1024
    $region57: #{_forward_impl.1} parent=1 // pred_fallthru
      _
    // Predicated region
    $region58: #{_forward_impl.1} parent=1 // pred_check
      _
    $region59: #{_forward_impl.1} parent=1 // pred_check_branch
      %120 = sbr.rel (0) target = $region61
    $region60: #{_forward_impl.1} parent=1 // pred_region
      %121 = dma.done [#allocation8], 1024
    $region61: #{_forward_impl.1} parent=1 // pred_fallthru
      _
    // Predicated region
    $region62: #{_forward_impl.1} parent=1 // pred_check
      _
    $region63: #{_forward_impl.1} parent=1 // pred_check_branch
      %123 = sbr.rel (0) target = $region65
    $region64: #{_forward_impl.1} parent=1 // pred_region
      %124 = dma.done [#allocation8], 1024
    $region65: #{_forward_impl.1} parent=1 // pred_fallthru
      _
    // Predicated region
    $region66: #{_forward_impl.1} parent=1 // pred_check
      _
    $region67: #{_forward_impl.1} parent=1 // pred_check_branch
      %126 = sbr.rel (0) target = $region69
    $region68: #{_forward_impl.1} parent=1 // pred_region
      %127 = dma.done [#allocation11], 128
    $region69: #{_forward_impl.1} parent=1 // pred_fallthru
      _
    // Predicated region
    $region70: #{_forward_impl.1} parent=1 // pred_check
      _
    $region71: #{_forward_impl.1} parent=1 // pred_check_branch
      %129 = sbr.rel (0) target = $region73
    $region72: #{_forward_impl.1} parent=1 // pred_region
      %130 = dma.done [#allocation11], 2048
    $region73: #{_forward_impl.1} parent=1 // pred_fallthru
      _
    %v132 = vld [vmem:[#allocation2] sm:$0xff]
    %v133 = vld [vmem:[#allocation2 + $0x8] sm:$0xff]
    %v134 = vld [vmem:[#allocation2 + $0x10] sm:$0xff]
    %v135 = vld [vmem:[#allocation2 + $0x18] sm:$0xff]
    %v136 = vld [vmem:[#allocation2 + $0x20] sm:$0xff]
    %v137 = vld [vmem:[#allocation2 + $0x28] sm:$0xff]
    %v138 = vld [vmem:[#allocation2 + $0x30] sm:$0xff]
    %v139 = vld [vmem:[#allocation2 + $0x38] sm:$0xff]
    %v140 = vld [vmem:[#allocation2 + $0x40] sm:$0xff]
    %v141 = vld [vmem:[#allocation2 + $0x48] sm:$0xff]
    %v142 = vld [vmem:[#allocation2 + $0x50] sm:$0xff]
    %v143 = vld [vmem:[#allocation2 + $0x58] sm:$0xff]
    %v144 = vld [vmem:[#allocation2 + $0x60] sm:$0xff]
    %v145 = vld [vmem:[#allocation2 + $0x68] sm:$0xff]
    %v146 = vld [vmem:[#allocation2 + $0x70] sm:$0xff]
    %v147 = vld [vmem:[#allocation2 + $0x78] sm:$0xff]
    %v148 = vld [vmem:[#allocation2 + $0x80] sm:$0xff]
    %v149 = vld [vmem:[#allocation2 + $0x88] sm:$0xff]
    %v150 = vld [vmem:[#allocation2 + $0x90] sm:$0xff]
    %v151 = vld [vmem:[#allocation2 + $0x98] sm:$0xff]
    %v152 = vld [vmem:[#allocation2 + $0xa0] sm:$0xff]
    %v153 = vld [vmem:[#allocation2 + $0xa8] sm:$0xff]
    %v154 = vld [vmem:[#allocation2 + $0xb0] sm:$0xff]
    %v155 = vld [vmem:[#allocation2 + $0xb8] sm:$0xff]
    %v156 = vld [vmem:[#allocation2 + $0xc0] sm:$0xff]
    %v157 = vld [vmem:[#allocation2 + $0xc8] sm:$0xff]
    %v158 = vld [vmem:[#allocation2 + $0xd0] sm:$0xff]
    %v159 = vld [vmem:[#allocation2 + $0xd8] sm:$0xff]
    %v160 = vld [vmem:[#allocation2 + $0xe0] sm:$0xff]
    %v161 = vld [vmem:[#allocation2 + $0xe8] sm:$0xff]
    %v162 = vld [vmem:[#allocation2 + $0xf0] sm:$0xff]
    %v163 = vld [vmem:[#allocation2 + $0xf8] sm:$0xff]
    %v164 = vld [vmem:[#allocation4] sm:$0xf]
    %v165 = vld [vmem:[#allocation4 + $0x4] sm:$0xf]
    %v166 = vld [vmem:[#allocation4 + $0x8] sm:$0xf]
    %v167 = vld [vmem:[#allocation4 + $0xc] sm:$0xf]
    %v168 = vld [vmem:[#allocation4 + $0x10] sm:$0xf]
    %v169 = vld [vmem:[#allocation4 + $0x14] sm:$0xf]
    %v170 = vld [vmem:[#allocation4 + $0x18] sm:$0xf]
    %v171 = vld [vmem:[#allocation4 + $0x1c] sm:$0xf]
    %v172 = vld [vmem:[#allocation4 + $0x20] sm:$0xf]
    %v173 = vld [vmem:[#allocation4 + $0x24] sm:$0xf]
    %v174 = vld [vmem:[#allocation4 + $0x28] sm:$0xf]
    %v175 = vld [vmem:[#allocation4 + $0x2c] sm:$0xf]
    %v176 = vld [vmem:[#allocation4 + $0x30] sm:$0xf]
    %v177 = vld [vmem:[#allocation4 + $0x34] sm:$0xf]
    %v178 = vld [vmem:[#allocation4 + $0x38] sm:$0xf]
    %v179 = vld [vmem:[#allocation4 + $0x3c] sm:$0xf]
    %v180 = vld [vmem:[#allocation4 + $0x40] sm:$0xf]
    %v181 = vld [vmem:[#allocation4 + $0x44] sm:$0xf]
    %v182 = vld [vmem:[#allocation4 + $0x48] sm:$0xf]
    %v183 = vld [vmem:[#allocation4 + $0x4c] sm:$0xf]
    %v184 = vld [vmem:[#allocation4 + $0x50] sm:$0xf]
    %v185 = vld [vmem:[#allocation4 + $0x54] sm:$0xf]
    %v186 = vld [vmem:[#allocation4 + $0x58] sm:$0xf]
    %v187 = vld [vmem:[#allocation4 + $0x5c] sm:$0xf]
    %v188 = vld [vmem:[#allocation4 + $0x60] sm:$0xf]
    %v189 = vld [vmem:[#allocation4 + $0x64] sm:$0xf]
    %v190 = vld [vmem:[#allocation4 + $0x68] sm:$0xf]
    %v191 = vld [vmem:[#allocation4 + $0x6c] sm:$0xf]
    %v192 = vld [vmem:[#allocation4 + $0x70] sm:$0xf]
    %v193 = vld [vmem:[#allocation4 + $0x74] sm:$0xf]
    %v194 = vld [vmem:[#allocation4 + $0x78] sm:$0xf]
    %v195 = vld [vmem:[#allocation4 + $0x7c] sm:$0xf]
    %v228 = vunpack.c.l.b16 %v132
    %v229 = vunpack.c.h.b16 %v132
    %v230 = vunpack.c.l.b16 %v133
    %v231 = vunpack.c.h.b16 %v133
    %v232 = vunpack.c.l.b16 %v134
    %v233 = vunpack.c.h.b16 %v134
    %v234 = vunpack.c.l.b16 %v135
    %v235 = vunpack.c.h.b16 %v135
    %v236 = vunpack.c.l.b16 %v136
    %v237 = vunpack.c.h.b16 %v136
    %v238 = vunpack.c.l.b16 %v137
    %v239 = vunpack.c.h.b16 %v137
    %v240 = vunpack.c.l.b16 %v138
    %v241 = vunpack.c.h.b16 %v138
    %v242 = vunpack.c.l.b16 %v139
    %v243 = vunpack.c.h.b16 %v139
    %v244 = vunpack.c.l.b16 %v140
    %v245 = vunpack.c.h.b16 %v140
    %v246 = vunpack.c.l.b16 %v141
    %v247 = vunpack.c.h.b16 %v141
    %v248 = vunpack.c.l.b16 %v142
    %v249 = vunpack.c.h.b16 %v142
    %v250 = vunpack.c.l.b16 %v143
    %v251 = vunpack.c.h.b16 %v143
    %v252 = vunpack.c.l.b16 %v144
    %v253 = vunpack.c.h.b16 %v144
    %v254 = vunpack.c.l.b16 %v145
    %v255 = vunpack.c.h.b16 %v145
    %v256 = vunpack.c.l.b16 %v146
    %v257 = vunpack.c.h.b16 %v146
    %v258 = vunpack.c.l.b16 %v147
    %v259 = vunpack.c.h.b16 %v147
    %v260 = vunpack.c.l.b16 %v148
    %v261 = vunpack.c.h.b16 %v148
    %v262 = vunpack.c.l.b16 %v149
    %v263 = vunpack.c.h.b16 %v149
    %v264 = vunpack.c.l.b16 %v150
    %v265 = vunpack.c.h.b16 %v150
    %v266 = vunpack.c.l.b16 %v151
    %v267 = vunpack.c.h.b16 %v151
    %v268 = vunpack.c.l.b16 %v152
    %v269 = vunpack.c.h.b16 %v152
    %v270 = vunpack.c.l.b16 %v153
    %v271 = vunpack.c.h.b16 %v153
    %v272 = vunpack.c.l.b16 %v154
    %v273 = vunpack.c.h.b16 %v154
    %v274 = vunpack.c.l.b16 %v155
    %v275 = vunpack.c.h.b16 %v155
    %v276 = vunpack.c.l.b16 %v156
    %v277 = vunpack.c.h.b16 %v156
    %v278 = vunpack.c.l.b16 %v157
    %v279 = vunpack.c.h.b16 %v157
    %v280 = vunpack.c.l.b16 %v158
    %v281 = vunpack.c.h.b16 %v158
    %v282 = vunpack.c.l.b16 %v159
    %v283 = vunpack.c.h.b16 %v159
    %v284 = vunpack.c.l.b16 %v160
    %v285 = vunpack.c.h.b16 %v160
    %v286 = vunpack.c.l.b16 %v161
    %v287 = vunpack.c.h.b16 %v161
    %v288 = vunpack.c.l.b16 %v162
    %v289 = vunpack.c.h.b16 %v162
    %v290 = vunpack.c.l.b16 %v163
    %v291 = vunpack.c.h.b16 %v163
    %v292 = vpack.c.b16 %v230, %v228
    %v293 = vpack.c.b16 %v231, %v229
    %v294 = vpack.c.b16 %v234, %v232
    %v295 = vpack.c.b16 %v235, %v233
    %v296 = vpack.c.b16 %v238, %v236
    %v297 = vpack.c.b16 %v239, %v237
    %v298 = vpack.c.b16 %v242, %v240
    %v299 = vpack.c.b16 %v243, %v241
    %v300 = vpack.c.b16 %v246, %v244
    %v301 = vpack.c.b16 %v247, %v245
    %v302 = vpack.c.b16 %v250, %v248
    %v303 = vpack.c.b16 %v251, %v249
    %v304 = vpack.c.b16 %v254, %v252
    %v305 = vpack.c.b16 %v255, %v253
    %v306 = vpack.c.b16 %v258, %v256
    %v307 = vpack.c.b16 %v259, %v257
    %v308 = vpack.c.b16 %v262, %v260
    %v309 = vpack.c.b16 %v263, %v261
    %v310 = vpack.c.b16 %v266, %v264
    %v311 = vpack.c.b16 %v267, %v265
    %v312 = vpack.c.b16 %v270, %v268
    %v313 = vpack.c.b16 %v271, %v269
    %v314 = vpack.c.b16 %v274, %v272
    %v315 = vpack.c.b16 %v275, %v273
    %v316 = vpack.c.b16 %v278, %v276
    %v317 = vpack.c.b16 %v279, %v277
    %v318 = vpack.c.b16 %v282, %v280
    %v319 = vpack.c.b16 %v283, %v281
    %v320 = vpack.c.b16 %v286, %v284
    %v321 = vpack.c.b16 %v287, %v285
    %v322 = vpack.c.b16 %v290, %v288
    %v323 = vpack.c.b16 %v291, %v289
    %v388 = vunpack.c.l.b16 %v164
    %v389 = vunpack.c.l.b16 %v165
    %v390 = vunpack.c.l.b16 %v166
    %v391 = vunpack.c.l.b16 %v167
    %v392 = vunpack.c.l.b16 %v168
    %v393 = vunpack.c.l.b16 %v169
    %v394 = vunpack.c.l.b16 %v170
    %v395 = vunpack.c.l.b16 %v171
    %v396 = vunpack.c.l.b16 %v172
    %v397 = vunpack.c.l.b16 %v173
    %v398 = vunpack.c.l.b16 %v174
    %v399 = vunpack.c.l.b16 %v175
    %v400 = vunpack.c.l.b16 %v176
    %v401 = vunpack.c.l.b16 %v177
    %v402 = vunpack.c.l.b16 %v178
    %v403 = vunpack.c.l.b16 %v179
    %v404 = vunpack.c.l.b16 %v180
    %v405 = vunpack.c.l.b16 %v181
    %v406 = vunpack.c.l.b16 %v182
    %v407 = vunpack.c.l.b16 %v183
    %v408 = vunpack.c.l.b16 %v184
    %v409 = vunpack.c.l.b16 %v185
    %v410 = vunpack.c.l.b16 %v186
    %v411 = vunpack.c.l.b16 %v187
    %v412 = vunpack.c.l.b16 %v188
    %v413 = vunpack.c.l.b16 %v189
    %v414 = vunpack.c.l.b16 %v190
    %v415 = vunpack.c.l.b16 %v191
    %v416 = vunpack.c.l.b16 %v192
    %v417 = vunpack.c.l.b16 %v193
    %v418 = vunpack.c.l.b16 %v194
    %v419 = vunpack.c.l.b16 %v195
    %v420 = vpack.c.b16 %v389, %v388
    %v421 = vpack.c.b16 %v391, %v390
    %v422 = vpack.c.b16 %v393, %v392
    %v423 = vpack.c.b16 %v395, %v394
    %v424 = vpack.c.b16 %v397, %v396
    %v425 = vpack.c.b16 %v399, %v398
    %v426 = vpack.c.b16 %v401, %v400
    %v427 = vpack.c.b16 %v403, %v402
    %v428 = vpack.c.b16 %v405, %v404
    %v429 = vpack.c.b16 %v407, %v406
    %v430 = vpack.c.b16 %v409, %v408
    %v431 = vpack.c.b16 %v411, %v410
    %v432 = vpack.c.b16 %v413, %v412
    %v433 = vpack.c.b16 %v415, %v414
    %v434 = vpack.c.b16 %v417, %v416
    %v435 = vpack.c.b16 %v419, %v418
    %452 = vmatprep.subr.bf16.mxu0 0
    %453 = vmatpush1.bf16.msra.mxu0 %v427
    %454 = vmatprep.subr.bf16.mxu0 0
    %455 = vmatpush1.bf16.msra.mxu0 %v426
    %456 = vmatprep.subr.bf16.mxu0 0
    %457 = vmatpush1.bf16.msra.mxu0 %v425
    %458 = vmatprep.subr.bf16.mxu0 0
    %459 = vmatpush1.bf16.msra.mxu0 %v424
    %460 = vmatprep.subr.bf16.mxu0 0
    %461 = vmatpush1.bf16.msra.mxu0 %v423
    %462 = vmatprep.subr.bf16.mxu0 0
    %463 = vmatpush1.bf16.msra.mxu0 %v422
    %464 = vmatprep.subr.bf16.mxu0 0
    %465 = vmatpush1.bf16.msra.mxu0 %v421
    %466 = vmatprep.subr.bf16.mxu0 0
    %467 = vmatpush1.bf16.msra.mxu0 %v420
    %468 = vmatprep.subr.bf16.mxu0 0
    %469 = vmatpush2.bf16.msra.mxu0 %v435
    %470 = vmatprep.subr.bf16.mxu0 0
    %471 = vmatpush2.bf16.msra.mxu0 %v434
    %472 = vmatprep.subr.bf16.mxu0 0
    %473 = vmatpush2.bf16.msra.mxu0 %v433
    %474 = vmatprep.subr.bf16.mxu0 0
    %475 = vmatpush2.bf16.msra.mxu0 %v432
    %476 = vmatprep.subr.bf16.mxu0 0
    %477 = vmatpush2.bf16.msra.mxu0 %v431
    %478 = vmatprep.subr.bf16.mxu0 0
    %479 = vmatpush2.bf16.msra.mxu0 %v430
    %480 = vmatprep.subr.bf16.mxu0 0
    %481 = vmatpush2.bf16.msra.mxu0 %v429
    %482 = vmatprep.subr.bf16.mxu0 0
    %483 = vmatpush2.bf16.msra.mxu0 %v428
    %484 = vmatprep.mubr.bf16.mxu0 %v293
    %485 = vmatmul.mubr.bf16.gmra.mxu0 %v292
    %v486 = vpop.f32.mrf.mxu0
    %v487 = vadd.f32 0.0, %v486
    %v488 = vpop.f32.mrf.mxu0
    %v489 = vpop.f32.mrf.mxu0
    %v490 = vadd.f32 0.0, %v489
    %v491 = vpop.f32.mrf.mxu0
    %492 = vmatprep.mubr.bf16.mxu0 %v295
    %493 = vmatmul.mubr.bf16.gmra.mxu0 %v294
    %v494 = vpop.f32.mrf.mxu0
    %v495 = vadd.f32 0.0, %v494
    %v496 = vpop.f32.mrf.mxu0
    %v497 = vpop.f32.mrf.mxu0
    %v498 = vadd.f32 0.0, %v497
    %v499 = vpop.f32.mrf.mxu0
    %500 = vmatprep.mubr.bf16.mxu0 %v297
    %501 = vmatmul.mubr.bf16.gmra.mxu0 %v296
    %v502 = vpop.f32.mrf.mxu0
    %v503 = vadd.f32 0.0, %v502
    %v504 = vpop.f32.mrf.mxu0
    %v505 = vpop.f32.mrf.mxu0
    %v506 = vadd.f32 0.0, %v505
    %v507 = vpop.f32.mrf.mxu0
    %508 = vmatprep.mubr.bf16.mxu0 %v299
    %509 = vmatmul.mubr.bf16.gmra.mxu0 %v298
    %v510 = vpop.f32.mrf.mxu0
    %v511 = vadd.f32 0.0, %v510
    %v512 = vpop.f32.mrf.mxu0
    %v513 = vpop.f32.mrf.mxu0
    %v514 = vadd.f32 0.0, %v513
    %v515 = vpop.f32.mrf.mxu0
    %516 = vmatprep.mubr.bf16.mxu0 %v301
    %517 = vmatmul.mubr.bf16.gmra.mxu0 %v300
    %v518 = vpop.f32.mrf.mxu0
    %v519 = vadd.f32 0.0, %v518
    %v520 = vpop.f32.mrf.mxu0
    %v521 = vpop.f32.mrf.mxu0
    %v522 = vadd.f32 0.0, %v521
    %v523 = vpop.f32.mrf.mxu0
    %524 = vmatprep.mubr.bf16.mxu0 %v303
    %525 = vmatmul.mubr.bf16.gmra.mxu0 %v302
    %v526 = vpop.f32.mrf.mxu0
    %v527 = vadd.f32 0.0, %v526
    %v528 = vpop.f32.mrf.mxu0
    %v529 = vpop.f32.mrf.mxu0
    %v530 = vadd.f32 0.0, %v529
    %v531 = vpop.f32.mrf.mxu0
    %532 = vmatprep.mubr.bf16.mxu0 %v305
    %533 = vmatmul.mubr.bf16.gmra.mxu0 %v304
    %v534 = vpop.f32.mrf.mxu0
    %v535 = vadd.f32 0.0, %v534
    %v536 = vpop.f32.mrf.mxu0
    %v537 = vpop.f32.mrf.mxu0
    %v538 = vadd.f32 0.0, %v537
    %v539 = vpop.f32.mrf.mxu0
    %540 = vmatprep.mubr.bf16.mxu0 %v307
    %541 = vmatmul.mubr.bf16.gmra.mxu0 %v306
    %v542 = vpop.f32.mrf.mxu0
    %v543 = vadd.f32 0.0, %v542
    %v544 = vpop.f32.mrf.mxu0
    %v545 = vpop.f32.mrf.mxu0
    %v546 = vadd.f32 0.0, %v545
    %v547 = vpop.f32.mrf.mxu0
    %548 = vmatprep.mubr.bf16.mxu0 %v309
    %549 = vmatmul.mubr.bf16.gmra.mxu0 %v308
    %v550 = vpop.f32.mrf.mxu0
    %v551 = vadd.f32 0.0, %v550
    %v552 = vpop.f32.mrf.mxu0
    %v553 = vpop.f32.mrf.mxu0
    %v554 = vadd.f32 0.0, %v553
    %v555 = vpop.f32.mrf.mxu0
    %556 = vmatprep.mubr.bf16.mxu0 %v311
    %557 = vmatmul.mubr.bf16.gmra.mxu0 %v310
    %v558 = vpop.f32.mrf.mxu0
    %v559 = vadd.f32 0.0, %v558
    %v560 = vpop.f32.mrf.mxu0
    %v561 = vpop.f32.mrf.mxu0
    %v562 = vadd.f32 0.0, %v561
    %v563 = vpop.f32.mrf.mxu0
    %564 = vmatprep.mubr.bf16.mxu0 %v313
    %565 = vmatmul.mubr.bf16.gmra.mxu0 %v312
    %v566 = vpop.f32.mrf.mxu0
    %v567 = vadd.f32 0.0, %v566
    %v568 = vpop.f32.mrf.mxu0
    %v569 = vpop.f32.mrf.mxu0
    %v570 = vadd.f32 0.0, %v569
    %v571 = vpop.f32.mrf.mxu0
    %572 = vmatprep.mubr.bf16.mxu0 %v315
    %573 = vmatmul.mubr.bf16.gmra.mxu0 %v314
    %v574 = vpop.f32.mrf.mxu0
    %v575 = vadd.f32 0.0, %v574
    %v576 = vpop.f32.mrf.mxu0
    %v577 = vpop.f32.mrf.mxu0
    %v578 = vadd.f32 0.0, %v577
    %v579 = vpop.f32.mrf.mxu0
    %580 = vmatprep.mubr.bf16.mxu0 %v317
    %581 = vmatmul.mubr.bf16.gmra.mxu0 %v316
    %v582 = vpop.f32.mrf.mxu0
    %v583 = vadd.f32 0.0, %v582
    %v584 = vpop.f32.mrf.mxu0
    %v585 = vpop.f32.mrf.mxu0
    %v586 = vadd.f32 0.0, %v585
    %v587 = vpop.f32.mrf.mxu0
    %588 = vmatprep.mubr.bf16.mxu0 %v319
    %589 = vmatmul.mubr.bf16.gmra.mxu0 %v318
    %v590 = vpop.f32.mrf.mxu0
    %v591 = vadd.f32 0.0, %v590
    %v592 = vpop.f32.mrf.mxu0
    %v593 = vpop.f32.mrf.mxu0
    %v594 = vadd.f32 0.0, %v593
    %v595 = vpop.f32.mrf.mxu0
    %596 = vmatprep.mubr.bf16.mxu0 %v321
    %597 = vmatmul.mubr.bf16.gmra.mxu0 %v320
    %v598 = vpop.f32.mrf.mxu0
    %v599 = vadd.f32 0.0, %v598
    %v600 = vpop.f32.mrf.mxu0
    %v601 = vpop.f32.mrf.mxu0
    %v602 = vadd.f32 0.0, %v601
    %v603 = vpop.f32.mrf.mxu0
    %604 = vmatprep.mubr.bf16.mxu0 %v323
    %605 = vmatmul.mubr.bf16.gmra.mxu0 %v322
    %v606 = vpop.f32.mrf.mxu0
    %v607 = vadd.f32 0.0, %v606
    %v608 = vpop.f32.mrf.mxu0
    %v609 = vpop.f32.mrf.mxu0
    %v610 = vadd.f32 0.0, %v609
    %v611 = vpop.f32.mrf.mxu0
    %612 = vdwg.mxu0
    %v613 = vpack.c.bf16 %v490, %v487
    %v614 = vpack.c.bf16 %v498, %v495
    %v615 = vpack.c.bf16 %v506, %v503
    %v616 = vpack.c.bf16 %v514, %v511
    %v617 = vpack.c.bf16 %v522, %v519
    %v618 = vpack.c.bf16 %v530, %v527
    %v619 = vpack.c.bf16 %v538, %v535
    %v620 = vpack.c.bf16 %v546, %v543
    %v621 = vpack.c.bf16 %v554, %v551
    %v622 = vpack.c.bf16 %v562, %v559
    %v623 = vpack.c.bf16 %v570, %v567
    %v624 = vpack.c.bf16 %v578, %v575
    %v625 = vpack.c.bf16 %v586, %v583
    %v626 = vpack.c.bf16 %v594, %v591
    %v627 = vpack.c.bf16 %v602, %v599
    %v628 = vpack.c.bf16 %v610, %v607
    %v629 = vld [vmem:[#allocation6] sm:$0xf]
    %v630 = vld [vmem:[#allocation6 + $0x4] sm:$0xf]
    %v631 = vld [vmem:[#allocation6 + $0x8] sm:$0xf]
    %v632 = vld [vmem:[#allocation6 + $0xc] sm:$0xf]
    %v633 = vld [vmem:[#allocation6 + $0x10] sm:$0xf]
    %v634 = vld [vmem:[#allocation6 + $0x14] sm:$0xf]
    %v635 = vld [vmem:[#allocation6 + $0x18] sm:$0xf]
    %v636 = vld [vmem:[#allocation6 + $0x1c] sm:$0xf]
    %v637 = vld [vmem:[#allocation6 + $0x20] sm:$0xf]
    %v638 = vld [vmem:[#allocation6 + $0x24] sm:$0xf]
    %v639 = vld [vmem:[#allocation6 + $0x28] sm:$0xf]
    %v640 = vld [vmem:[#allocation6 + $0x2c] sm:$0xf]
    %v641 = vld [vmem:[#allocation6 + $0x30] sm:$0xf]
    %v642 = vld [vmem:[#allocation6 + $0x34] sm:$0xf]
    %v643 = vld [vmem:[#allocation6 + $0x38] sm:$0xf]
    %v644 = vld [vmem:[#allocation6 + $0x3c] sm:$0xf]
    %v645 = vld [vmem:[%s3] sm:$0x1]
    %v647 = vlaneseq
    %v648 = vshrl.u32 %v647, 7
    %v649 = vsub.s32 0, %v648
    %v650 = vrot.slane %v645, %v649
    %v668 = vunpack.c.l.b16 %v629
    %v669 = vunpack.c.l.b16 %v630
    %v670 = vunpack.c.l.b16 %v631
    %v671 = vunpack.c.l.b16 %v632
    %v672 = vunpack.c.l.b16 %v633
    %v673 = vunpack.c.l.b16 %v634
    %v674 = vunpack.c.l.b16 %v635
    %v675 = vunpack.c.l.b16 %v636
    %v676 = vunpack.c.l.b16 %v637
    %v677 = vunpack.c.l.b16 %v638
    %v678 = vunpack.c.l.b16 %v639
    %v679 = vunpack.c.l.b16 %v640
    %v680 = vunpack.c.l.b16 %v641
    %v681 = vunpack.c.l.b16 %v642
    %v682 = vunpack.c.l.b16 %v643
    %v683 = vunpack.c.l.b16 %v644
    %v684 = vpack.c.b16 %v669, %v668
    %v685 = vpack.c.b16 %v671, %v670
    %v686 = vpack.c.b16 %v673, %v672
    %v687 = vpack.c.b16 %v675, %v674
    %v688 = vpack.c.b16 %v677, %v676
    %v689 = vpack.c.b16 %v679, %v678
    %v690 = vpack.c.b16 %v681, %v680
    %v691 = vpack.c.b16 %v683, %v682
    %700 = vmatprep.subr.bf16.mxu0 0
    %701 = vmatpush1.bf16.msra.mxu0 %v691
    %702 = vmatprep.subr.bf16.mxu0 0
    %703 = vmatpush1.bf16.msra.mxu0 %v690
    %704 = vmatprep.subr.bf16.mxu0 0
    %705 = vmatpush1.bf16.msra.mxu0 %v689
    %706 = vmatprep.subr.bf16.mxu0 0
    %707 = vmatpush1.bf16.msra.mxu0 %v688
    %708 = vmatprep.subr.bf16.mxu0 0
    %709 = vmatpush1.bf16.msra.mxu0 %v687
    %710 = vmatprep.subr.bf16.mxu0 0
    %711 = vmatpush1.bf16.msra.mxu0 %v686
    %712 = vmatprep.subr.bf16.mxu0 0
    %713 = vmatpush1.bf16.msra.mxu0 %v685
    %714 = vmatprep.subr.bf16.mxu0 0
    %715 = vmatpush1.bf16.msra.mxu0 %v684
    %716 = vmatprep.subr.bf16.mxu0 0
    %717 = vmatpush2.bf16.msra.mxu0 0
    %718 = vmatprep.subr.bf16.mxu0 0
    %719 = vmatpush2.bf16.msra.mxu0 0
    %720 = vmatprep.subr.bf16.mxu0 0
    %721 = vmatpush2.bf16.msra.mxu0 0
    %722 = vmatprep.subr.bf16.mxu0 0
    %723 = vmatpush2.bf16.msra.mxu0 0
    %724 = vmatprep.subr.bf16.mxu0 0
    %725 = vmatpush2.bf16.msra.mxu0 0
    %726 = vmatprep.subr.bf16.mxu0 0
    %727 = vmatpush2.bf16.msra.mxu0 0
    %728 = vmatprep.subr.bf16.mxu0 0
    %729 = vmatpush2.bf16.msra.mxu0 0
    %730 = vmatprep.subr.bf16.mxu0 0
    %731 = vmatpush2.bf16.msra.mxu0 0
    %732 = vmatprep.mubr.bf16.mxu0 0
    %733 = vmatmul.mubr.bf16.gmra.mxu0 %v613
    %v734 = vpop.f32.mrf.mxu0
    %v735 = vadd.f32 %v650, %v734
    %v736 = vpop.f32.mrf.mxu0
    %v737 = vpop.f32.mrf.mxu0
    %v738 = vadd.f32 %v650, %v737
    %v739 = vpop.f32.mrf.mxu0
    %740 = vmatprep.mubr.bf16.mxu0 0
    %741 = vmatmul.mubr.bf16.gmra.mxu0 %v614
    %v742 = vpop.f32.mrf.mxu0
    %v743 = vadd.f32 %v650, %v742
    %v744 = vpop.f32.mrf.mxu0
    %v745 = vpop.f32.mrf.mxu0
    %v746 = vadd.f32 %v650, %v745
    %v747 = vpop.f32.mrf.mxu0
    %748 = vmatprep.mubr.bf16.mxu0 0
    %749 = vmatmul.mubr.bf16.gmra.mxu0 %v615
    %v750 = vpop.f32.mrf.mxu0
    %v751 = vadd.f32 %v650, %v750
    %v752 = vpop.f32.mrf.mxu0
    %v753 = vpop.f32.mrf.mxu0
    %v754 = vadd.f32 %v650, %v753
    %v755 = vpop.f32.mrf.mxu0
    %756 = vmatprep.mubr.bf16.mxu0 0
    %757 = vmatmul.mubr.bf16.gmra.mxu0 %v616
    %v758 = vpop.f32.mrf.mxu0
    %v759 = vadd.f32 %v650, %v758
    %v760 = vpop.f32.mrf.mxu0
    %v761 = vpop.f32.mrf.mxu0
    %v762 = vadd.f32 %v650, %v761
    %v763 = vpop.f32.mrf.mxu0
    %764 = vmatprep.mubr.bf16.mxu0 0
    %765 = vmatmul.mubr.bf16.gmra.mxu0 %v617
    %v766 = vpop.f32.mrf.mxu0
    %v767 = vadd.f32 %v650, %v766
    %v768 = vpop.f32.mrf.mxu0
    %v769 = vpop.f32.mrf.mxu0
    %v770 = vadd.f32 %v650, %v769
    %v771 = vpop.f32.mrf.mxu0
    %772 = vmatprep.mubr.bf16.mxu0 0
    %773 = vmatmul.mubr.bf16.gmra.mxu0 %v618
    %v774 = vpop.f32.mrf.mxu0
    %v775 = vadd.f32 %v650, %v774
    %v776 = vpop.f32.mrf.mxu0
    %v777 = vpop.f32.mrf.mxu0
    %v778 = vadd.f32 %v650, %v777
    %v779 = vpop.f32.mrf.mxu0
    %780 = vmatprep.mubr.bf16.mxu0 0
    %781 = vmatmul.mubr.bf16.gmra.mxu0 %v619
    %v782 = vpop.f32.mrf.mxu0
    %v783 = vadd.f32 %v650, %v782
    %v784 = vpop.f32.mrf.mxu0
    %v785 = vpop.f32.mrf.mxu0
    %v786 = vadd.f32 %v650, %v785
    %v787 = vpop.f32.mrf.mxu0
    %788 = vmatprep.mubr.bf16.mxu0 0
    %789 = vmatmul.mubr.bf16.gmra.mxu0 %v620
    %v790 = vpop.f32.mrf.mxu0
    %v791 = vadd.f32 %v650, %v790
    %v792 = vpop.f32.mrf.mxu0
    %v793 = vpop.f32.mrf.mxu0
    %v794 = vadd.f32 %v650, %v793
    %v795 = vpop.f32.mrf.mxu0
    %796 = vmatprep.mubr.bf16.mxu0 0
    %797 = vmatmul.mubr.bf16.gmra.mxu0 %v621
    %v798 = vpop.f32.mrf.mxu0
    %v799 = vadd.f32 %v650, %v798
    %v800 = vpop.f32.mrf.mxu0
    %v801 = vpop.f32.mrf.mxu0
    %v802 = vadd.f32 %v650, %v801
    %v803 = vpop.f32.mrf.mxu0
    %804 = vmatprep.mubr.bf16.mxu0 0
    %805 = vmatmul.mubr.bf16.gmra.mxu0 %v622
    %v806 = vpop.f32.mrf.mxu0
    %v807 = vadd.f32 %v650, %v806
    %v808 = vpop.f32.mrf.mxu0
    %v809 = vpop.f32.mrf.mxu0
    %v810 = vadd.f32 %v650, %v809
    %v811 = vpop.f32.mrf.mxu0
    %812 = vmatprep.mubr.bf16.mxu0 0
    %813 = vmatmul.mubr.bf16.gmra.mxu0 %v623
    %v814 = vpop.f32.mrf.mxu0
    %v815 = vadd.f32 %v650, %v814
    %v816 = vpop.f32.mrf.mxu0
    %v817 = vpop.f32.mrf.mxu0
    %v818 = vadd.f32 %v650, %v817
    %v819 = vpop.f32.mrf.mxu0
    %820 = vmatprep.mubr.bf16.mxu0 0
    %821 = vmatmul.mubr.bf16.gmra.mxu0 %v624
    %v822 = vpop.f32.mrf.mxu0
    %v823 = vadd.f32 %v650, %v822
    %v824 = vpop.f32.mrf.mxu0
    %v825 = vpop.f32.mrf.mxu0
    %v826 = vadd.f32 %v650, %v825
    %v827 = vpop.f32.mrf.mxu0
    %828 = vmatprep.mubr.bf16.mxu0 0
    %829 = vmatmul.mubr.bf16.gmra.mxu0 %v625
    %v830 = vpop.f32.mrf.mxu0
    %v831 = vadd.f32 %v650, %v830
    %v832 = vpop.f32.mrf.mxu0
    %v833 = vpop.f32.mrf.mxu0
    %v834 = vadd.f32 %v650, %v833
    %v835 = vpop.f32.mrf.mxu0
    %836 = vmatprep.mubr.bf16.mxu0 0
    %837 = vmatmul.mubr.bf16.gmra.mxu0 %v626
    %v838 = vpop.f32.mrf.mxu0
    %v839 = vadd.f32 %v650, %v838
    %v840 = vpop.f32.mrf.mxu0
    %v841 = vpop.f32.mrf.mxu0
    %v842 = vadd.f32 %v650, %v841
    %v843 = vpop.f32.mrf.mxu0
    %844 = vmatprep.mubr.bf16.mxu0 0
    %845 = vmatmul.mubr.bf16.gmra.mxu0 %v627
    %v846 = vpop.f32.mrf.mxu0
    %v847 = vadd.f32 %v650, %v846
    %v848 = vpop.f32.mrf.mxu0
    %v849 = vpop.f32.mrf.mxu0
    %v850 = vadd.f32 %v650, %v849
    %v851 = vpop.f32.mrf.mxu0
    %852 = vmatprep.mubr.bf16.mxu0 0
    %853 = vmatmul.mubr.bf16.gmra.mxu0 %v628
    %v854 = vpop.f32.mrf.mxu0
    %v855 = vadd.f32 %v650, %v854
    %v856 = vpop.f32.mrf.mxu0
    %v857 = vpop.f32.mrf.mxu0
    %v858 = vadd.f32 %v650, %v857
    %v859 = vpop.f32.mrf.mxu0
    %860 = vdwg.mxu0
    %v861 = vmax.f32 %v735, 0.0
    %v862 = vmax.f32 %v738, 0.0
    %v863 = vmax.f32 %v743, 0.0
    %v864 = vmax.f32 %v746, 0.0
    %v865 = vmax.f32 %v751, 0.0
    %v866 = vmax.f32 %v754, 0.0
    %v867 = vmax.f32 %v759, 0.0
    %v868 = vmax.f32 %v762, 0.0
    %v869 = vmax.f32 %v767, 0.0
    %v870 = vmax.f32 %v770, 0.0
    %v871 = vmax.f32 %v775, 0.0
    %v872 = vmax.f32 %v778, 0.0
    %v873 = vmax.f32 %v783, 0.0
    %v874 = vmax.f32 %v786, 0.0
    %v875 = vmax.f32 %v791, 0.0
    %v876 = vmax.f32 %v794, 0.0
    %v877 = vmax.f32 %v799, 0.0
    %v878 = vmax.f32 %v802, 0.0
    %v879 = vmax.f32 %v807, 0.0
    %v880 = vmax.f32 %v810, 0.0
    %v881 = vmax.f32 %v815, 0.0
    %v882 = vmax.f32 %v818, 0.0
    %v883 = vmax.f32 %v823, 0.0
    %v884 = vmax.f32 %v826, 0.0
    %v885 = vmax.f32 %v831, 0.0
    %v886 = vmax.f32 %v834, 0.0
    %v887 = vmax.f32 %v839, 0.0
    %v888 = vmax.f32 %v842, 0.0
    %v889 = vmax.f32 %v847, 0.0
    %v890 = vmax.f32 %v850, 0.0
    %v891 = vmax.f32 %v855, 0.0
    %v892 = vmax.f32 %v858, 0.0
    %v893 = vpack.c.bf16 %v862, %v861
    %v894 = vpack.c.bf16 %v864, %v863
    %v895 = vpack.c.bf16 %v866, %v865
    %v896 = vpack.c.bf16 %v868, %v867
    %v897 = vpack.c.bf16 %v870, %v869
    %v898 = vpack.c.bf16 %v872, %v871
    %v899 = vpack.c.bf16 %v874, %v873
    %v900 = vpack.c.bf16 %v876, %v875
    %v901 = vpack.c.bf16 %v878, %v877
    %v902 = vpack.c.bf16 %v880, %v879
    %v903 = vpack.c.bf16 %v882, %v881
    %v904 = vpack.c.bf16 %v884, %v883
    %v905 = vpack.c.bf16 %v886, %v885
    %v906 = vpack.c.bf16 %v888, %v887
    %v907 = vpack.c.bf16 %v890, %v889
    %v908 = vpack.c.bf16 %v892, %v891
    %909 = vmatprep.subr.bf16.mxu0 0
    %910 = vmatpush1.bf16.msra.mxu0 %v900
    %911 = vmatprep.subr.bf16.mxu0 0
    %912 = vmatpush1.bf16.msra.mxu0 %v899
    %913 = vmatprep.subr.bf16.mxu0 0
    %914 = vmatpush1.bf16.msra.mxu0 %v898
    %915 = vmatprep.subr.bf16.mxu0 0
    %916 = vmatpush1.bf16.msra.mxu0 %v897
    %917 = vmatprep.subr.bf16.mxu0 0
    %918 = vmatpush1.bf16.msra.mxu0 %v896
    %919 = vmatprep.subr.bf16.mxu0 0
    %920 = vmatpush1.bf16.msra.mxu0 %v895
    %921 = vmatprep.subr.bf16.mxu0 0
    %922 = vmatpush1.bf16.msra.mxu0 %v894
    %923 = vmatprep.subr.bf16.mxu0 0
    %924 = vmatpush1.bf16.msra.mxu0 %v893
    %925 = vmatprep.subr.bf16.mxu0 0
    %926 = vmatpush2.bf16.msra.mxu0 %v908
    %927 = vmatprep.subr.bf16.mxu0 0
    %928 = vmatpush2.bf16.msra.mxu0 %v907
    %929 = vmatprep.subr.bf16.mxu0 0
    %930 = vmatpush2.bf16.msra.mxu0 %v906
    %931 = vmatprep.subr.bf16.mxu0 0
    %932 = vmatpush2.bf16.msra.mxu0 %v905
    %933 = vmatprep.subr.bf16.mxu0 0
    %934 = vmatpush2.bf16.msra.mxu0 %v904
    %935 = vmatprep.subr.bf16.mxu0 0
    %936 = vmatpush2.bf16.msra.mxu0 %v903
    %937 = vmatprep.subr.bf16.mxu0 0
    %938 = vmatpush2.bf16.msra.mxu0 %v902
    %939 = vmatprep.subr.bf16.mxu0 0
    %940 = vmatpush2.bf16.msra.mxu0 %v901
    %941 = vmatprep.mubr.bf16.mxu0 %v293
    %942 = vmatmul.mubr.bf16.gmra.mxu0 %v292
    %v943 = vpop.f32.mrf.mxu0
    %v944 = vadd.f32 0.0, %v943
    %v945 = vpop.f32.mrf.mxu0
    %v946 = vpop.f32.mrf.mxu0
    %v947 = vadd.f32 0.0, %v946
    %v948 = vpop.f32.mrf.mxu0
    %949 = vmatprep.mubr.bf16.mxu0 %v295
    %950 = vmatmul.mubr.bf16.gmra.mxu0 %v294
    %v951 = vpop.f32.mrf.mxu0
    %v952 = vadd.f32 0.0, %v951
    %v953 = vpop.f32.mrf.mxu0
    %v954 = vpop.f32.mrf.mxu0
    %v955 = vadd.f32 0.0, %v954
    %v956 = vpop.f32.mrf.mxu0
    %957 = vmatprep.mubr.bf16.mxu0 %v297
    %958 = vmatmul.mubr.bf16.gmra.mxu0 %v296
    %v959 = vpop.f32.mrf.mxu0
    %v960 = vadd.f32 0.0, %v959
    %v961 = vpop.f32.mrf.mxu0
    %v962 = vpop.f32.mrf.mxu0
    %v963 = vadd.f32 0.0, %v962
    %v964 = vpop.f32.mrf.mxu0
    %965 = vmatprep.mubr.bf16.mxu0 %v299
    %966 = vmatmul.mubr.bf16.gmra.mxu0 %v298
    %v967 = vpop.f32.mrf.mxu0
    %v968 = vadd.f32 0.0, %v967
    %v969 = vpop.f32.mrf.mxu0
    %v970 = vpop.f32.mrf.mxu0
    %v971 = vadd.f32 0.0, %v970
    %v972 = vpop.f32.mrf.mxu0
    %973 = vmatprep.mubr.bf16.mxu0 %v301
    %974 = vmatmul.mubr.bf16.gmra.mxu0 %v300
    %v975 = vpop.f32.mrf.mxu0
    %v976 = vadd.f32 0.0, %v975
    %v977 = vpop.f32.mrf.mxu0
    %v978 = vpop.f32.mrf.mxu0
    %v979 = vadd.f32 0.0, %v978
    %v980 = vpop.f32.mrf.mxu0
    %981 = vmatprep.mubr.bf16.mxu0 %v303
    %982 = vmatmul.mubr.bf16.gmra.mxu0 %v302
    %v983 = vpop.f32.mrf.mxu0
    %v984 = vadd.f32 0.0, %v983
    %v985 = vpop.f32.mrf.mxu0
    %v986 = vpop.f32.mrf.mxu0
    %v987 = vadd.f32 0.0, %v986
    %v988 = vpop.f32.mrf.mxu0
    %989 = vmatprep.mubr.bf16.mxu0 %v305
    %990 = vmatmul.mubr.bf16.gmra.mxu0 %v304
    %v991 = vpop.f32.mrf.mxu0
    %v992 = vadd.f32 0.0, %v991
    %v993 = vpop.f32.mrf.mxu0
    %v994 = vpop.f32.mrf.mxu0
    %v995 = vadd.f32 0.0, %v994
    %v996 = vpop.f32.mrf.mxu0
    %997 = vmatprep.mubr.bf16.mxu0 %v307
    %998 = vmatmul.mubr.bf16.gmra.mxu0 %v306
    %v999 = vpop.f32.mrf.mxu0
    %v1000 = vadd.f32 0.0, %v999
    %v1001 = vpop.f32.mrf.mxu0
    %v1002 = vpop.f32.mrf.mxu0
    %v1003 = vadd.f32 0.0, %v1002
    %v1004 = vpop.f32.mrf.mxu0
    %1005 = vmatprep.mubr.bf16.mxu0 %v309
    %1006 = vmatmul.mubr.bf16.gmra.mxu0 %v308
    %v1007 = vpop.f32.mrf.mxu0
    %v1008 = vadd.f32 0.0, %v1007
    %v1009 = vpop.f32.mrf.mxu0
    %v1010 = vpop.f32.mrf.mxu0
    %v1011 = vadd.f32 0.0, %v1010
    %v1012 = vpop.f32.mrf.mxu0
    %1013 = vmatprep.mubr.bf16.mxu0 %v311
    %1014 = vmatmul.mubr.bf16.gmra.mxu0 %v310
    %v1015 = vpop.f32.mrf.mxu0
    %v1016 = vadd.f32 0.0, %v1015
    %v1017 = vpop.f32.mrf.mxu0
    %v1018 = vpop.f32.mrf.mxu0
    %v1019 = vadd.f32 0.0, %v1018
    %v1020 = vpop.f32.mrf.mxu0
    %1021 = vmatprep.mubr.bf16.mxu0 %v313
    %1022 = vmatmul.mubr.bf16.gmra.mxu0 %v312
    %v1023 = vpop.f32.mrf.mxu0
    %v1024 = vadd.f32 0.0, %v1023
    %v1025 = vpop.f32.mrf.mxu0
    %v1026 = vpop.f32.mrf.mxu0
    %v1027 = vadd.f32 0.0, %v1026
    %v1028 = vpop.f32.mrf.mxu0
    %1029 = vmatprep.mubr.bf16.mxu0 %v315
    %1030 = vmatmul.mubr.bf16.gmra.mxu0 %v314
    %v1031 = vpop.f32.mrf.mxu0
    %v1032 = vadd.f32 0.0, %v1031
    %v1033 = vpop.f32.mrf.mxu0
    %v1034 = vpop.f32.mrf.mxu0
    %v1035 = vadd.f32 0.0, %v1034
    %v1036 = vpop.f32.mrf.mxu0
    %1037 = vmatprep.mubr.bf16.mxu0 %v317
    %1038 = vmatmul.mubr.bf16.gmra.mxu0 %v316
    %v1039 = vpop.f32.mrf.mxu0
    %v1040 = vadd.f32 0.0, %v1039
    %v1041 = vpop.f32.mrf.mxu0
    %v1042 = vpop.f32.mrf.mxu0
    %v1043 = vadd.f32 0.0, %v1042
    %v1044 = vpop.f32.mrf.mxu0
    %1045 = vmatprep.mubr.bf16.mxu0 %v319
    %1046 = vmatmul.mubr.bf16.gmra.mxu0 %v318
    %v1047 = vpop.f32.mrf.mxu0
    %v1048 = vadd.f32 0.0, %v1047
    %v1049 = vpop.f32.mrf.mxu0
    %v1050 = vpop.f32.mrf.mxu0
    %v1051 = vadd.f32 0.0, %v1050
    %v1052 = vpop.f32.mrf.mxu0
    %1053 = vmatprep.mubr.bf16.mxu0 %v321
    %1054 = vmatmul.mubr.bf16.gmra.mxu0 %v320
    %v1055 = vpop.f32.mrf.mxu0
    %v1056 = vadd.f32 0.0, %v1055
    %v1057 = vpop.f32.mrf.mxu0
    %v1058 = vpop.f32.mrf.mxu0
    %v1059 = vadd.f32 0.0, %v1058
    %v1060 = vpop.f32.mrf.mxu0
    %1061 = vmatprep.mubr.bf16.mxu0 %v323
    %1062 = vmatmul.mubr.bf16.gmra.mxu0 %v322
    %v1063 = vpop.f32.mrf.mxu0
    %v1064 = vadd.f32 0.0, %v1063
    %v1065 = vpop.f32.mrf.mxu0
    %v1066 = vpop.f32.mrf.mxu0
    %v1067 = vadd.f32 0.0, %v1066
    %v1068 = vpop.f32.mrf.mxu0
    %1069 = vdwg.mxu0
    %v1070 = vpack.c.bf16 %v947, %v944
    %v1071 = vpack.c.bf16 %v955, %v952
    %v1072 = vpack.c.bf16 %v963, %v960
    %v1073 = vpack.c.bf16 %v971, %v968
    %v1074 = vpack.c.bf16 %v979, %v976
    %v1075 = vpack.c.bf16 %v987, %v984
    %v1076 = vpack.c.bf16 %v995, %v992
    %v1077 = vpack.c.bf16 %v1003, %v1000
    %v1078 = vpack.c.bf16 %v1011, %v1008
    %v1079 = vpack.c.bf16 %v1019, %v1016
    %v1080 = vpack.c.bf16 %v1027, %v1024
    %v1081 = vpack.c.bf16 %v1035, %v1032
    %v1082 = vpack.c.bf16 %v1043, %v1040
    %v1083 = vpack.c.bf16 %v1051, %v1048
    %v1084 = vpack.c.bf16 %v1059, %v1056
    %v1085 = vpack.c.bf16 %v1067, %v1064
    %v1086 = vld [vmem:[#allocation7] sm:$0xf]
    %v1087 = vld [vmem:[#allocation7 + $0x4] sm:$0xf]
    %v1088 = vld [vmem:[#allocation7 + $0x8] sm:$0xf]
    %v1089 = vld [vmem:[#allocation7 + $0xc] sm:$0xf]
    %v1090 = vld [vmem:[#allocation7 + $0x10] sm:$0xf]
    %v1091 = vld [vmem:[#allocation7 + $0x14] sm:$0xf]
    %v1092 = vld [vmem:[#allocation7 + $0x18] sm:$0xf]
    %v1093 = vld [vmem:[#allocation7 + $0x1c] sm:$0xf]
    %v1094 = vld [vmem:[#allocation7 + $0x20] sm:$0xf]
    %v1095 = vld [vmem:[#allocation7 + $0x24] sm:$0xf]
    %v1096 = vld [vmem:[#allocation7 + $0x28] sm:$0xf]
    %v1097 = vld [vmem:[#allocation7 + $0x2c] sm:$0xf]
    %v1098 = vld [vmem:[#allocation7 + $0x30] sm:$0xf]
    %v1099 = vld [vmem:[#allocation7 + $0x34] sm:$0xf]
    %v1100 = vld [vmem:[#allocation7 + $0x38] sm:$0xf]
    %v1101 = vld [vmem:[#allocation7 + $0x3c] sm:$0xf]
    %v1102 = vld [vmem:[%s5] sm:$0x1]
    %v1104 = vlaneseq
    %v1105 = vshrl.u32 %v1104, 7
    %v1106 = vsub.s32 0, %v1105
    %v1107 = vrot.slane %v1102, %v1106
    %v1125 = vunpack.c.l.b16 %v1086
    %v1126 = vunpack.c.l.b16 %v1087
    %v1127 = vunpack.c.l.b16 %v1088
    %v1128 = vunpack.c.l.b16 %v1089
    %v1129 = vunpack.c.l.b16 %v1090
    %v1130 = vunpack.c.l.b16 %v1091
    %v1131 = vunpack.c.l.b16 %v1092
    %v1132 = vunpack.c.l.b16 %v1093
    %v1133 = vunpack.c.l.b16 %v1094
    %v1134 = vunpack.c.l.b16 %v1095
    %v1135 = vunpack.c.l.b16 %v1096
    %v1136 = vunpack.c.l.b16 %v1097
    %v1137 = vunpack.c.l.b16 %v1098
    %v1138 = vunpack.c.l.b16 %v1099
    %v1139 = vunpack.c.l.b16 %v1100
    %v1140 = vunpack.c.l.b16 %v1101
    %v1141 = vpack.c.b16 %v1126, %v1125
    %v1142 = vpack.c.b16 %v1128, %v1127
    %v1143 = vpack.c.b16 %v1130, %v1129
    %v1144 = vpack.c.b16 %v1132, %v1131
    %v1145 = vpack.c.b16 %v1134, %v1133
    %v1146 = vpack.c.b16 %v1136, %v1135
    %v1147 = vpack.c.b16 %v1138, %v1137
    %v1148 = vpack.c.b16 %v1140, %v1139
    %1157 = vmatprep.subr.bf16.mxu0 0
    %1158 = vmatpush1.bf16.msra.mxu0 %v1148
    %1159 = vmatprep.subr.bf16.mxu0 0
    %1160 = vmatpush1.bf16.msra.mxu0 %v1147
    %1161 = vmatprep.subr.bf16.mxu0 0
    %1162 = vmatpush1.bf16.msra.mxu0 %v1146
    %1163 = vmatprep.subr.bf16.mxu0 0
    %1164 = vmatpush1.bf16.msra.mxu0 %v1145
    %1165 = vmatprep.subr.bf16.mxu0 0
    %1166 = vmatpush1.bf16.msra.mxu0 %v1144
    %1167 = vmatprep.subr.bf16.mxu0 0
    %1168 = vmatpush1.bf16.msra.mxu0 %v1143
    %1169 = vmatprep.subr.bf16.mxu0 0
    %1170 = vmatpush1.bf16.msra.mxu0 %v1142
    %1171 = vmatprep.subr.bf16.mxu0 0
    %1172 = vmatpush1.bf16.msra.mxu0 %v1141
    %1173 = vmatprep.subr.bf16.mxu0 0
    %1174 = vmatpush2.bf16.msra.mxu0 0
    %1175 = vmatprep.subr.bf16.mxu0 0
    %1176 = vmatpush2.bf16.msra.mxu0 0
    %1177 = vmatprep.subr.bf16.mxu0 0
    %1178 = vmatpush2.bf16.msra.mxu0 0
    %1179 = vmatprep.subr.bf16.mxu0 0
    %1180 = vmatpush2.bf16.msra.mxu0 0
    %1181 = vmatprep.subr.bf16.mxu0 0
    %1182 = vmatpush2.bf16.msra.mxu0 0
    %1183 = vmatprep.subr.bf16.mxu0 0
    %1184 = vmatpush2.bf16.msra.mxu0 0
    %1185 = vmatprep.subr.bf16.mxu0 0
    %1186 = vmatpush2.bf16.msra.mxu0 0
    %1187 = vmatprep.subr.bf16.mxu0 0
    %1188 = vmatpush2.bf16.msra.mxu0 0
    %1189 = vmatprep.mubr.bf16.mxu0 0
    %1190 = vmatmul.mubr.bf16.gmra.mxu0 %v1070
    %v1191 = vpop.f32.mrf.mxu0
    %v1192 = vadd.f32 %v1107, %v1191
    %v1193 = vpop.f32.mrf.mxu0
    %v1194 = vpop.f32.mrf.mxu0
    %v1195 = vadd.f32 %v1107, %v1194
    %v1196 = vpop.f32.mrf.mxu0
    %1197 = vmatprep.mubr.bf16.mxu0 0
    %1198 = vmatmul.mubr.bf16.gmra.mxu0 %v1071
    %v1199 = vpop.f32.mrf.mxu0
    %v1200 = vadd.f32 %v1107, %v1199
    %v1201 = vpop.f32.mrf.mxu0
    %v1202 = vpop.f32.mrf.mxu0
    %v1203 = vadd.f32 %v1107, %v1202
    %v1204 = vpop.f32.mrf.mxu0
    %1205 = vmatprep.mubr.bf16.mxu0 0
    %1206 = vmatmul.mubr.bf16.gmra.mxu0 %v1072
    %v1207 = vpop.f32.mrf.mxu0
    %v1208 = vadd.f32 %v1107, %v1207
    %v1209 = vpop.f32.mrf.mxu0
    %v1210 = vpop.f32.mrf.mxu0
    %v1211 = vadd.f32 %v1107, %v1210
    %v1212 = vpop.f32.mrf.mxu0
    %1213 = vmatprep.mubr.bf16.mxu0 0
    %1214 = vmatmul.mubr.bf16.gmra.mxu0 %v1073
    %v1215 = vpop.f32.mrf.mxu0
    %v1216 = vadd.f32 %v1107, %v1215
    %v1217 = vpop.f32.mrf.mxu0
    %v1218 = vpop.f32.mrf.mxu0
    %v1219 = vadd.f32 %v1107, %v1218
    %v1220 = vpop.f32.mrf.mxu0
    %1221 = vmatprep.mubr.bf16.mxu0 0
    %1222 = vmatmul.mubr.bf16.gmra.mxu0 %v1074
    %v1223 = vpop.f32.mrf.mxu0
    %v1224 = vadd.f32 %v1107, %v1223
    %v1225 = vpop.f32.mrf.mxu0
    %v1226 = vpop.f32.mrf.mxu0
    %v1227 = vadd.f32 %v1107, %v1226
    %v1228 = vpop.f32.mrf.mxu0
    %1229 = vmatprep.mubr.bf16.mxu0 0
    %1230 = vmatmul.mubr.bf16.gmra.mxu0 %v1075
    %v1231 = vpop.f32.mrf.mxu0
    %v1232 = vadd.f32 %v1107, %v1231
    %v1233 = vpop.f32.mrf.mxu0
    %v1234 = vpop.f32.mrf.mxu0
    %v1235 = vadd.f32 %v1107, %v1234
    %v1236 = vpop.f32.mrf.mxu0
    %1237 = vmatprep.mubr.bf16.mxu0 0
    %1238 = vmatmul.mubr.bf16.gmra.mxu0 %v1076
    %v1239 = vpop.f32.mrf.mxu0
    %v1240 = vadd.f32 %v1107, %v1239
    %v1241 = vpop.f32.mrf.mxu0
    %v1242 = vpop.f32.mrf.mxu0
    %v1243 = vadd.f32 %v1107, %v1242
    %v1244 = vpop.f32.mrf.mxu0
    %1245 = vmatprep.mubr.bf16.mxu0 0
    %1246 = vmatmul.mubr.bf16.gmra.mxu0 %v1077
    %v1247 = vpop.f32.mrf.mxu0
    %v1248 = vadd.f32 %v1107, %v1247
    %v1249 = vpop.f32.mrf.mxu0
    %v1250 = vpop.f32.mrf.mxu0
    %v1251 = vadd.f32 %v1107, %v1250
    %v1252 = vpop.f32.mrf.mxu0
    %1253 = vmatprep.mubr.bf16.mxu0 0
    %1254 = vmatmul.mubr.bf16.gmra.mxu0 %v1078
    %v1255 = vpop.f32.mrf.mxu0
    %v1256 = vadd.f32 %v1107, %v1255
    %v1257 = vpop.f32.mrf.mxu0
    %v1258 = vpop.f32.mrf.mxu0
    %v1259 = vadd.f32 %v1107, %v1258
    %v1260 = vpop.f32.mrf.mxu0
    %1261 = vmatprep.mubr.bf16.mxu0 0
    %1262 = vmatmul.mubr.bf16.gmra.mxu0 %v1079
    %v1263 = vpop.f32.mrf.mxu0
    %v1264 = vadd.f32 %v1107, %v1263
    %v1265 = vpop.f32.mrf.mxu0
    %v1266 = vpop.f32.mrf.mxu0
    %v1267 = vadd.f32 %v1107, %v1266
    %v1268 = vpop.f32.mrf.mxu0
    %1269 = vmatprep.mubr.bf16.mxu0 0
    %1270 = vmatmul.mubr.bf16.gmra.mxu0 %v1080
    %v1271 = vpop.f32.mrf.mxu0
    %v1272 = vadd.f32 %v1107, %v1271
    %v1273 = vpop.f32.mrf.mxu0
    %v1274 = vpop.f32.mrf.mxu0
    %v1275 = vadd.f32 %v1107, %v1274
    %v1276 = vpop.f32.mrf.mxu0
    %1277 = vmatprep.mubr.bf16.mxu0 0
    %1278 = vmatmul.mubr.bf16.gmra.mxu0 %v1081
    %v1279 = vpop.f32.mrf.mxu0
    %v1280 = vadd.f32 %v1107, %v1279
    %v1281 = vpop.f32.mrf.mxu0
    %v1282 = vpop.f32.mrf.mxu0
    %v1283 = vadd.f32 %v1107, %v1282
    %v1284 = vpop.f32.mrf.mxu0
    %1285 = vmatprep.mubr.bf16.mxu0 0
    %1286 = vmatmul.mubr.bf16.gmra.mxu0 %v1082
    %v1287 = vpop.f32.mrf.mxu0
    %v1288 = vadd.f32 %v1107, %v1287
    %v1289 = vpop.f32.mrf.mxu0
    %v1290 = vpop.f32.mrf.mxu0
    %v1291 = vadd.f32 %v1107, %v1290
    %v1292 = vpop.f32.mrf.mxu0
    %1293 = vmatprep.mubr.bf16.mxu0 0
    %1294 = vmatmul.mubr.bf16.gmra.mxu0 %v1083
    %v1295 = vpop.f32.mrf.mxu0
    %v1296 = vadd.f32 %v1107, %v1295
    %v1297 = vpop.f32.mrf.mxu0
    %v1298 = vpop.f32.mrf.mxu0
    %v1299 = vadd.f32 %v1107, %v1298
    %v1300 = vpop.f32.mrf.mxu0
    %1301 = vmatprep.mubr.bf16.mxu0 0
    %1302 = vmatmul.mubr.bf16.gmra.mxu0 %v1084
    %v1303 = vpop.f32.mrf.mxu0
    %v1304 = vadd.f32 %v1107, %v1303
    %v1305 = vpop.f32.mrf.mxu0
    %v1306 = vpop.f32.mrf.mxu0
    %v1307 = vadd.f32 %v1107, %v1306
    %v1308 = vpop.f32.mrf.mxu0
    %1309 = vmatprep.mubr.bf16.mxu0 0
    %1310 = vmatmul.mubr.bf16.gmra.mxu0 %v1085
    %v1311 = vpop.f32.mrf.mxu0
    %v1312 = vadd.f32 %v1107, %v1311
    %v1313 = vpop.f32.mrf.mxu0
    %v1314 = vpop.f32.mrf.mxu0
    %v1315 = vadd.f32 %v1107, %v1314
    %v1316 = vpop.f32.mrf.mxu0
    %1317 = vdwg.mxu0
    %v1318 = vmax.f32 %v1192, 0.0
    %v1319 = vmax.f32 %v1195, 0.0
    %v1320 = vmax.f32 %v1200, 0.0
    %v1321 = vmax.f32 %v1203, 0.0
    %v1322 = vmax.f32 %v1208, 0.0
    %v1323 = vmax.f32 %v1211, 0.0
    %v1324 = vmax.f32 %v1216, 0.0
    %v1325 = vmax.f32 %v1219, 0.0
    %v1326 = vmax.f32 %v1224, 0.0
    %v1327 = vmax.f32 %v1227, 0.0
    %v1328 = vmax.f32 %v1232, 0.0
    %v1329 = vmax.f32 %v1235, 0.0
    %v1330 = vmax.f32 %v1240, 0.0
    %v1331 = vmax.f32 %v1243, 0.0
    %v1332 = vmax.f32 %v1248, 0.0
    %v1333 = vmax.f32 %v1251, 0.0
    %v1334 = vmax.f32 %v1256, 0.0
    %v1335 = vmax.f32 %v1259, 0.0
    %v1336 = vmax.f32 %v1264, 0.0
    %v1337 = vmax.f32 %v1267, 0.0
    %v1338 = vmax.f32 %v1272, 0.0
    %v1339 = vmax.f32 %v1275, 0.0
    %v1340 = vmax.f32 %v1280, 0.0
    %v1341 = vmax.f32 %v1283, 0.0
    %v1342 = vmax.f32 %v1288, 0.0
    %v1343 = vmax.f32 %v1291, 0.0
    %v1344 = vmax.f32 %v1296, 0.0
    %v1345 = vmax.f32 %v1299, 0.0
    %v1346 = vmax.f32 %v1304, 0.0
    %v1347 = vmax.f32 %v1307, 0.0
    %v1348 = vmax.f32 %v1312, 0.0
    %v1349 = vmax.f32 %v1315, 0.0
    %v1350 = vpack.c.bf16 %v1319, %v1318
    %v1351 = vpack.c.bf16 %v1321, %v1320
    %v1352 = vpack.c.bf16 %v1323, %v1322
    %v1353 = vpack.c.bf16 %v1325, %v1324
    %v1354 = vpack.c.bf16 %v1327, %v1326
    %v1355 = vpack.c.bf16 %v1329, %v1328
    %v1356 = vpack.c.bf16 %v1331, %v1330
    %v1357 = vpack.c.bf16 %v1333, %v1332
    %v1358 = vpack.c.bf16 %v1335, %v1334
    %v1359 = vpack.c.bf16 %v1337, %v1336
    %v1360 = vpack.c.bf16 %v1339, %v1338
    %v1361 = vpack.c.bf16 %v1341, %v1340
    %v1362 = vpack.c.bf16 %v1343, %v1342
    %v1363 = vpack.c.bf16 %v1345, %v1344
    %v1364 = vpack.c.bf16 %v1347, %v1346
    %v1365 = vpack.c.bf16 %v1349, %v1348
    %1366 = vmatprep.subr.bf16.mxu0 0
    %1367 = vmatpush1.bf16.msra.mxu0 %v1357
    %1368 = vmatprep.subr.bf16.mxu0 0
    %1369 = vmatpush1.bf16.msra.mxu0 %v1356
    %1370 = vmatprep.subr.bf16.mxu0 0
    %1371 = vmatpush1.bf16.msra.mxu0 %v1355
    %1372 = vmatprep.subr.bf16.mxu0 0
    %1373 = vmatpush1.bf16.msra.mxu0 %v1354
    %1374 = vmatprep.subr.bf16.mxu0 0
    %1375 = vmatpush1.bf16.msra.mxu0 %v1353
    %1376 = vmatprep.subr.bf16.mxu0 0
    %1377 = vmatpush1.bf16.msra.mxu0 %v1352
    %1378 = vmatprep.subr.bf16.mxu0 0
    %1379 = vmatpush1.bf16.msra.mxu0 %v1351
    %1380 = vmatprep.subr.bf16.mxu0 0
    %1381 = vmatpush1.bf16.msra.mxu0 %v1350
    %1382 = vmatprep.subr.bf16.mxu0 0
    %1383 = vmatpush2.bf16.msra.mxu0 %v1365
    %1384 = vmatprep.subr.bf16.mxu0 0
    %1385 = vmatpush2.bf16.msra.mxu0 %v1364
    %1386 = vmatprep.subr.bf16.mxu0 0
    %1387 = vmatpush2.bf16.msra.mxu0 %v1363
    %1388 = vmatprep.subr.bf16.mxu0 0
    %1389 = vmatpush2.bf16.msra.mxu0 %v1362
    %1390 = vmatprep.subr.bf16.mxu0 0
    %1391 = vmatpush2.bf16.msra.mxu0 %v1361
    %1392 = vmatprep.subr.bf16.mxu0 0
    %1393 = vmatpush2.bf16.msra.mxu0 %v1360
    %1394 = vmatprep.subr.bf16.mxu0 0
    %1395 = vmatpush2.bf16.msra.mxu0 %v1359
    %1396 = vmatprep.subr.bf16.mxu0 0
    %1397 = vmatpush2.bf16.msra.mxu0 %v1358
    %1398 = vmatprep.mubr.bf16.mxu0 %v293
    %1399 = vmatmul.mubr.bf16.gmra.mxu0 %v292
    %v1400 = vpop.f32.mrf.mxu0
    %v1401 = vadd.f32 0.0, %v1400
    %v1402 = vpop.f32.mrf.mxu0
    %v1403 = vpop.f32.mrf.mxu0
    %v1404 = vadd.f32 0.0, %v1403
    %v1405 = vpop.f32.mrf.mxu0
    %1406 = vmatprep.mubr.bf16.mxu0 %v295
    %1407 = vmatmul.mubr.bf16.gmra.mxu0 %v294
    %v1408 = vpop.f32.mrf.mxu0
    %v1409 = vadd.f32 0.0, %v1408
    %v1410 = vpop.f32.mrf.mxu0
    %v1411 = vpop.f32.mrf.mxu0
    %v1412 = vadd.f32 0.0, %v1411
    %v1413 = vpop.f32.mrf.mxu0
    %1414 = vmatprep.mubr.bf16.mxu0 %v297
    %1415 = vmatmul.mubr.bf16.gmra.mxu0 %v296
    %v1416 = vpop.f32.mrf.mxu0
    %v1417 = vadd.f32 0.0, %v1416
    %v1418 = vpop.f32.mrf.mxu0
    %v1419 = vpop.f32.mrf.mxu0
    %v1420 = vadd.f32 0.0, %v1419
    %v1421 = vpop.f32.mrf.mxu0
    %1422 = vmatprep.mubr.bf16.mxu0 %v299
    %1423 = vmatmul.mubr.bf16.gmra.mxu0 %v298
    %v1424 = vpop.f32.mrf.mxu0
    %v1425 = vadd.f32 0.0, %v1424
    %v1426 = vpop.f32.mrf.mxu0
    %v1427 = vpop.f32.mrf.mxu0
    %v1428 = vadd.f32 0.0, %v1427
    %v1429 = vpop.f32.mrf.mxu0
    %1430 = vmatprep.mubr.bf16.mxu0 %v301
    %1431 = vmatmul.mubr.bf16.gmra.mxu0 %v300
    %v1432 = vpop.f32.mrf.mxu0
    %v1433 = vadd.f32 0.0, %v1432
    %v1434 = vpop.f32.mrf.mxu0
    %v1435 = vpop.f32.mrf.mxu0
    %v1436 = vadd.f32 0.0, %v1435
    %v1437 = vpop.f32.mrf.mxu0
    %1438 = vmatprep.mubr.bf16.mxu0 %v303
    %1439 = vmatmul.mubr.bf16.gmra.mxu0 %v302
    %v1440 = vpop.f32.mrf.mxu0
    %v1441 = vadd.f32 0.0, %v1440
    %v1442 = vpop.f32.mrf.mxu0
    %v1443 = vpop.f32.mrf.mxu0
    %v1444 = vadd.f32 0.0, %v1443
    %v1445 = vpop.f32.mrf.mxu0
    %1446 = vmatprep.mubr.bf16.mxu0 %v305
    %1447 = vmatmul.mubr.bf16.gmra.mxu0 %v304
    %v1448 = vpop.f32.mrf.mxu0
    %v1449 = vadd.f32 0.0, %v1448
    %v1450 = vpop.f32.mrf.mxu0
    %v1451 = vpop.f32.mrf.mxu0
    %v1452 = vadd.f32 0.0, %v1451
    %v1453 = vpop.f32.mrf.mxu0
    %1454 = vmatprep.mubr.bf16.mxu0 %v307
    %1455 = vmatmul.mubr.bf16.gmra.mxu0 %v306
    %v1456 = vpop.f32.mrf.mxu0
    %v1457 = vadd.f32 0.0, %v1456
    %v1458 = vpop.f32.mrf.mxu0
    %v1459 = vpop.f32.mrf.mxu0
    %v1460 = vadd.f32 0.0, %v1459
    %v1461 = vpop.f32.mrf.mxu0
    %1462 = vmatprep.mubr.bf16.mxu0 %v309
    %1463 = vmatmul.mubr.bf16.gmra.mxu0 %v308
    %v1464 = vpop.f32.mrf.mxu0
    %v1465 = vadd.f32 0.0, %v1464
    %v1466 = vpop.f32.mrf.mxu0
    %v1467 = vpop.f32.mrf.mxu0
    %v1468 = vadd.f32 0.0, %v1467
    %v1469 = vpop.f32.mrf.mxu0
    %1470 = vmatprep.mubr.bf16.mxu0 %v311
    %1471 = vmatmul.mubr.bf16.gmra.mxu0 %v310
    %v1472 = vpop.f32.mrf.mxu0
    %v1473 = vadd.f32 0.0, %v1472
    %v1474 = vpop.f32.mrf.mxu0
    %v1475 = vpop.f32.mrf.mxu0
    %v1476 = vadd.f32 0.0, %v1475
    %v1477 = vpop.f32.mrf.mxu0
    %1478 = vmatprep.mubr.bf16.mxu0 %v313
    %1479 = vmatmul.mubr.bf16.gmra.mxu0 %v312
    %v1480 = vpop.f32.mrf.mxu0
    %v1481 = vadd.f32 0.0, %v1480
    %v1482 = vpop.f32.mrf.mxu0
    %v1483 = vpop.f32.mrf.mxu0
    %v1484 = vadd.f32 0.0, %v1483
    %v1485 = vpop.f32.mrf.mxu0
    %1486 = vmatprep.mubr.bf16.mxu0 %v315
    %1487 = vmatmul.mubr.bf16.gmra.mxu0 %v314
    %v1488 = vpop.f32.mrf.mxu0
    %v1489 = vadd.f32 0.0, %v1488
    %v1490 = vpop.f32.mrf.mxu0
    %v1491 = vpop.f32.mrf.mxu0
    %v1492 = vadd.f32 0.0, %v1491
    %v1493 = vpop.f32.mrf.mxu0
    %1494 = vmatprep.mubr.bf16.mxu0 %v317
    %1495 = vmatmul.mubr.bf16.gmra.mxu0 %v316
    %v1496 = vpop.f32.mrf.mxu0
    %v1497 = vadd.f32 0.0, %v1496
    %v1498 = vpop.f32.mrf.mxu0
    %v1499 = vpop.f32.mrf.mxu0
    %v1500 = vadd.f32 0.0, %v1499
    %v1501 = vpop.f32.mrf.mxu0
    %1502 = vmatprep.mubr.bf16.mxu0 %v319
    %1503 = vmatmul.mubr.bf16.gmra.mxu0 %v318
    %v1504 = vpop.f32.mrf.mxu0
    %v1505 = vadd.f32 0.0, %v1504
    %v1506 = vpop.f32.mrf.mxu0
    %v1507 = vpop.f32.mrf.mxu0
    %v1508 = vadd.f32 0.0, %v1507
    %v1509 = vpop.f32.mrf.mxu0
    %1510 = vmatprep.mubr.bf16.mxu0 %v321
    %1511 = vmatmul.mubr.bf16.gmra.mxu0 %v320
    %v1512 = vpop.f32.mrf.mxu0
    %v1513 = vadd.f32 0.0, %v1512
    %v1514 = vpop.f32.mrf.mxu0
    %v1515 = vpop.f32.mrf.mxu0
    %v1516 = vadd.f32 0.0, %v1515
    %v1517 = vpop.f32.mrf.mxu0
    %1518 = vmatprep.mubr.bf16.mxu0 %v323
    %1519 = vmatmul.mubr.bf16.gmra.mxu0 %v322
    %v1520 = vpop.f32.mrf.mxu0
    %v1521 = vadd.f32 0.0, %v1520
    %v1522 = vpop.f32.mrf.mxu0
    %v1523 = vpop.f32.mrf.mxu0
    %v1524 = vadd.f32 0.0, %v1523
    %v1525 = vpop.f32.mrf.mxu0
    %1526 = vdwg.mxu0
    %v1527 = vpack.c.bf16 %v1404, %v1401
    %v1528 = vpack.c.bf16 %v1412, %v1409
    %v1529 = vpack.c.bf16 %v1420, %v1417
    %v1530 = vpack.c.bf16 %v1428, %v1425
    %v1531 = vpack.c.bf16 %v1436, %v1433
    %v1532 = vpack.c.bf16 %v1444, %v1441
    %v1533 = vpack.c.bf16 %v1452, %v1449
    %v1534 = vpack.c.bf16 %v1460, %v1457
    %v1535 = vpack.c.bf16 %v1468, %v1465
    %v1536 = vpack.c.bf16 %v1476, %v1473
    %v1537 = vpack.c.bf16 %v1484, %v1481
    %v1538 = vpack.c.bf16 %v1492, %v1489
    %v1539 = vpack.c.bf16 %v1500, %v1497
    %v1540 = vpack.c.bf16 %v1508, %v1505
    %v1541 = vpack.c.bf16 %v1516, %v1513
    %v1542 = vpack.c.bf16 %v1524, %v1521
    %v1543 = vld [vmem:[#allocation9] sm:$0xf]
    %v1544 = vld [vmem:[#allocation9 + $0x4] sm:$0xf]
    %v1545 = vld [vmem:[#allocation9 + $0x8] sm:$0xf]
    %v1546 = vld [vmem:[#allocation9 + $0xc] sm:$0xf]
    %v1547 = vld [vmem:[#allocation9 + $0x10] sm:$0xf]
    %v1548 = vld [vmem:[#allocation9 + $0x14] sm:$0xf]
    %v1549 = vld [vmem:[#allocation9 + $0x18] sm:$0xf]
    %v1550 = vld [vmem:[#allocation9 + $0x1c] sm:$0xf]
    %v1551 = vld [vmem:[#allocation9 + $0x20] sm:$0xf]
    %v1552 = vld [vmem:[#allocation9 + $0x24] sm:$0xf]
    %v1553 = vld [vmem:[#allocation9 + $0x28] sm:$0xf]
    %v1554 = vld [vmem:[#allocation9 + $0x2c] sm:$0xf]
    %v1555 = vld [vmem:[#allocation9 + $0x30] sm:$0xf]
    %v1556 = vld [vmem:[#allocation9 + $0x34] sm:$0xf]
    %v1557 = vld [vmem:[#allocation9 + $0x38] sm:$0xf]
    %v1558 = vld [vmem:[#allocation9 + $0x3c] sm:$0xf]
    %v1559 = vld [vmem:[%s7] sm:$0x1]
    %v1561 = vlaneseq
    %v1562 = vshrl.u32 %v1561, 7
    %v1563 = vsub.s32 0, %v1562
    %v1564 = vrot.slane %v1559, %v1563
    %v1582 = vunpack.c.l.b16 %v1543
    %v1583 = vunpack.c.l.b16 %v1544
    %v1584 = vunpack.c.l.b16 %v1545
    %v1585 = vunpack.c.l.b16 %v1546
    %v1586 = vunpack.c.l.b16 %v1547
    %v1587 = vunpack.c.l.b16 %v1548
    %v1588 = vunpack.c.l.b16 %v1549
    %v1589 = vunpack.c.l.b16 %v1550
    %v1590 = vunpack.c.l.b16 %v1551
    %v1591 = vunpack.c.l.b16 %v1552
    %v1592 = vunpack.c.l.b16 %v1553
    %v1593 = vunpack.c.l.b16 %v1554
    %v1594 = vunpack.c.l.b16 %v1555
    %v1595 = vunpack.c.l.b16 %v1556
    %v1596 = vunpack.c.l.b16 %v1557
    %v1597 = vunpack.c.l.b16 %v1558
    %v1598 = vpack.c.b16 %v1583, %v1582
    %v1599 = vpack.c.b16 %v1585, %v1584
    %v1600 = vpack.c.b16 %v1587, %v1586
    %v1601 = vpack.c.b16 %v1589, %v1588
    %v1602 = vpack.c.b16 %v1591, %v1590
    %v1603 = vpack.c.b16 %v1593, %v1592
    %v1604 = vpack.c.b16 %v1595, %v1594
    %v1605 = vpack.c.b16 %v1597, %v1596
    %1614 = vmatprep.subr.bf16.mxu0 0
    %1615 = vmatpush1.bf16.msra.mxu0 %v1605
    %1616 = vmatprep.subr.bf16.mxu0 0
    %1617 = vmatpush1.bf16.msra.mxu0 %v1604
    %1618 = vmatprep.subr.bf16.mxu0 0
    %1619 = vmatpush1.bf16.msra.mxu0 %v1603
    %1620 = vmatprep.subr.bf16.mxu0 0
    %1621 = vmatpush1.bf16.msra.mxu0 %v1602
    %1622 = vmatprep.subr.bf16.mxu0 0
    %1623 = vmatpush1.bf16.msra.mxu0 %v1601
    %1624 = vmatprep.subr.bf16.mxu0 0
    %1625 = vmatpush1.bf16.msra.mxu0 %v1600
    %1626 = vmatprep.subr.bf16.mxu0 0
    %1627 = vmatpush1.bf16.msra.mxu0 %v1599
    %1628 = vmatprep.subr.bf16.mxu0 0
    %1629 = vmatpush1.bf16.msra.mxu0 %v1598
    %1630 = vmatprep.subr.bf16.mxu0 0
    %1631 = vmatpush2.bf16.msra.mxu0 0
    %1632 = vmatprep.subr.bf16.mxu0 0
    %1633 = vmatpush2.bf16.msra.mxu0 0
    %1634 = vmatprep.subr.bf16.mxu0 0
    %1635 = vmatpush2.bf16.msra.mxu0 0
    %1636 = vmatprep.subr.bf16.mxu0 0
    %1637 = vmatpush2.bf16.msra.mxu0 0
    %1638 = vmatprep.subr.bf16.mxu0 0
    %1639 = vmatpush2.bf16.msra.mxu0 0
    %1640 = vmatprep.subr.bf16.mxu0 0
    %1641 = vmatpush2.bf16.msra.mxu0 0
    %1642 = vmatprep.subr.bf16.mxu0 0
    %1643 = vmatpush2.bf16.msra.mxu0 0
    %1644 = vmatprep.subr.bf16.mxu0 0
    %1645 = vmatpush2.bf16.msra.mxu0 0
    %1646 = vmatprep.mubr.bf16.mxu0 0
    %1647 = vmatmul.mubr.bf16.gmra.mxu0 %v1527
    %v1648 = vpop.f32.mrf.mxu0
    %v1649 = vadd.f32 %v1564, %v1648
    %v1650 = vpop.f32.mrf.mxu0
    %v1651 = vpop.f32.mrf.mxu0
    %v1652 = vadd.f32 %v1564, %v1651
    %v1653 = vpop.f32.mrf.mxu0
    %1654 = vmatprep.mubr.bf16.mxu0 0
    %1655 = vmatmul.mubr.bf16.gmra.mxu0 %v1528
    %v1656 = vpop.f32.mrf.mxu0
    %v1657 = vadd.f32 %v1564, %v1656
    %v1658 = vpop.f32.mrf.mxu0
    %v1659 = vpop.f32.mrf.mxu0
    %v1660 = vadd.f32 %v1564, %v1659
    %v1661 = vpop.f32.mrf.mxu0
    %1662 = vmatprep.mubr.bf16.mxu0 0
    %1663 = vmatmul.mubr.bf16.gmra.mxu0 %v1529
    %v1664 = vpop.f32.mrf.mxu0
    %v1665 = vadd.f32 %v1564, %v1664
    %v1666 = vpop.f32.mrf.mxu0
    %v1667 = vpop.f32.mrf.mxu0
    %v1668 = vadd.f32 %v1564, %v1667
    %v1669 = vpop.f32.mrf.mxu0
    %1670 = vmatprep.mubr.bf16.mxu0 0
    %1671 = vmatmul.mubr.bf16.gmra.mxu0 %v1530
    %v1672 = vpop.f32.mrf.mxu0
    %v1673 = vadd.f32 %v1564, %v1672
    %v1674 = vpop.f32.mrf.mxu0
    %v1675 = vpop.f32.mrf.mxu0
    %v1676 = vadd.f32 %v1564, %v1675
    %v1677 = vpop.f32.mrf.mxu0
    %1678 = vmatprep.mubr.bf16.mxu0 0
    %1679 = vmatmul.mubr.bf16.gmra.mxu0 %v1531
    %v1680 = vpop.f32.mrf.mxu0
    %v1681 = vadd.f32 %v1564, %v1680
    %v1682 = vpop.f32.mrf.mxu0
    %v1683 = vpop.f32.mrf.mxu0
    %v1684 = vadd.f32 %v1564, %v1683
    %v1685 = vpop.f32.mrf.mxu0
    %1686 = vmatprep.mubr.bf16.mxu0 0
    %1687 = vmatmul.mubr.bf16.gmra.mxu0 %v1532
    %v1688 = vpop.f32.mrf.mxu0
    %v1689 = vadd.f32 %v1564, %v1688
    %v1690 = vpop.f32.mrf.mxu0
    %v1691 = vpop.f32.mrf.mxu0
    %v1692 = vadd.f32 %v1564, %v1691
    %v1693 = vpop.f32.mrf.mxu0
    %1694 = vmatprep.mubr.bf16.mxu0 0
    %1695 = vmatmul.mubr.bf16.gmra.mxu0 %v1533
    %v1696 = vpop.f32.mrf.mxu0
    %v1697 = vadd.f32 %v1564, %v1696
    %v1698 = vpop.f32.mrf.mxu0
    %v1699 = vpop.f32.mrf.mxu0
    %v1700 = vadd.f32 %v1564, %v1699
    %v1701 = vpop.f32.mrf.mxu0
    %1702 = vmatprep.mubr.bf16.mxu0 0
    %1703 = vmatmul.mubr.bf16.gmra.mxu0 %v1534
    %v1704 = vpop.f32.mrf.mxu0
    %v1705 = vadd.f32 %v1564, %v1704
    %v1706 = vpop.f32.mrf.mxu0
    %v1707 = vpop.f32.mrf.mxu0
    %v1708 = vadd.f32 %v1564, %v1707
    %v1709 = vpop.f32.mrf.mxu0
    %1710 = vmatprep.mubr.bf16.mxu0 0
    %1711 = vmatmul.mubr.bf16.gmra.mxu0 %v1535
    %v1712 = vpop.f32.mrf.mxu0
    %v1713 = vadd.f32 %v1564, %v1712
    %v1714 = vpop.f32.mrf.mxu0
    %v1715 = vpop.f32.mrf.mxu0
    %v1716 = vadd.f32 %v1564, %v1715
    %v1717 = vpop.f32.mrf.mxu0
    %1718 = vmatprep.mubr.bf16.mxu0 0
    %1719 = vmatmul.mubr.bf16.gmra.mxu0 %v1536
    %v1720 = vpop.f32.mrf.mxu0
    %v1721 = vadd.f32 %v1564, %v1720
    %v1722 = vpop.f32.mrf.mxu0
    %v1723 = vpop.f32.mrf.mxu0
    %v1724 = vadd.f32 %v1564, %v1723
    %v1725 = vpop.f32.mrf.mxu0
    %1726 = vmatprep.mubr.bf16.mxu0 0
    %1727 = vmatmul.mubr.bf16.gmra.mxu0 %v1537
    %v1728 = vpop.f32.mrf.mxu0
    %v1729 = vadd.f32 %v1564, %v1728
    %v1730 = vpop.f32.mrf.mxu0
    %v1731 = vpop.f32.mrf.mxu0
    %v1732 = vadd.f32 %v1564, %v1731
    %v1733 = vpop.f32.mrf.mxu0
    %1734 = vmatprep.mubr.bf16.mxu0 0
    %1735 = vmatmul.mubr.bf16.gmra.mxu0 %v1538
    %v1736 = vpop.f32.mrf.mxu0
    %v1737 = vadd.f32 %v1564, %v1736
    %v1738 = vpop.f32.mrf.mxu0
    %v1739 = vpop.f32.mrf.mxu0
    %v1740 = vadd.f32 %v1564, %v1739
    %v1741 = vpop.f32.mrf.mxu0
    %1742 = vmatprep.mubr.bf16.mxu0 0
    %1743 = vmatmul.mubr.bf16.gmra.mxu0 %v1539
    %v1744 = vpop.f32.mrf.mxu0
    %v1745 = vadd.f32 %v1564, %v1744
    %v1746 = vpop.f32.mrf.mxu0
    %v1747 = vpop.f32.mrf.mxu0
    %v1748 = vadd.f32 %v1564, %v1747
    %v1749 = vpop.f32.mrf.mxu0
    %1750 = vmatprep.mubr.bf16.mxu0 0
    %1751 = vmatmul.mubr.bf16.gmra.mxu0 %v1540
    %v1752 = vpop.f32.mrf.mxu0
    %v1753 = vadd.f32 %v1564, %v1752
    %v1754 = vpop.f32.mrf.mxu0
    %v1755 = vpop.f32.mrf.mxu0
    %v1756 = vadd.f32 %v1564, %v1755
    %v1757 = vpop.f32.mrf.mxu0
    %1758 = vmatprep.mubr.bf16.mxu0 0
    %1759 = vmatmul.mubr.bf16.gmra.mxu0 %v1541
    %v1760 = vpop.f32.mrf.mxu0
    %v1761 = vadd.f32 %v1564, %v1760
    %v1762 = vpop.f32.mrf.mxu0
    %v1763 = vpop.f32.mrf.mxu0
    %v1764 = vadd.f32 %v1564, %v1763
    %v1765 = vpop.f32.mrf.mxu0
    %1766 = vmatprep.mubr.bf16.mxu0 0
    %1767 = vmatmul.mubr.bf16.gmra.mxu0 %v1542
    %v1768 = vpop.f32.mrf.mxu0
    %v1769 = vadd.f32 %v1564, %v1768
    %v1770 = vpop.f32.mrf.mxu0
    %v1771 = vpop.f32.mrf.mxu0
    %v1772 = vadd.f32 %v1564, %v1771
    %v1773 = vpop.f32.mrf.mxu0
    %1774 = vdwg.mxu0
    %v1775 = vpack.c.bf16 %v1652, %v1649
    %v1776 = vpack.c.bf16 %v1660, %v1657
    %v1777 = vpack.c.bf16 %v1668, %v1665
    %v1778 = vpack.c.bf16 %v1676, %v1673
    %v1779 = vpack.c.bf16 %v1684, %v1681
    %v1780 = vpack.c.bf16 %v1692, %v1689
    %v1781 = vpack.c.bf16 %v1700, %v1697
    %v1782 = vpack.c.bf16 %v1708, %v1705
    %v1783 = vpack.c.bf16 %v1716, %v1713
    %v1784 = vpack.c.bf16 %v1724, %v1721
    %v1785 = vpack.c.bf16 %v1732, %v1729
    %v1786 = vpack.c.bf16 %v1740, %v1737
    %v1787 = vpack.c.bf16 %v1748, %v1745
    %v1788 = vpack.c.bf16 %v1756, %v1753
    %v1789 = vpack.c.bf16 %v1764, %v1761
    %v1790 = vpack.c.bf16 %v1772, %v1769
    %v1791 = vld [vmem:[#allocation10] sm:$0xff]
    %v1793 = vunpack.c.l.b16 %v1791
    %v1794 = vunpack.c.h.b16 %v1791
    %v1795 = vpack.c.b16 %v1793, %v1793
    %v1796 = vpack.c.b16 %v1794, %v1794
    %1799 = vmatprep.subr.bf16.mxu0 0
    %1800 = vmatpush1.bf16.msra.mxu0 %v1782
    %1801 = vmatprep.subr.bf16.mxu0 0
    %1802 = vmatpush1.bf16.msra.mxu0 %v1781
    %1803 = vmatprep.subr.bf16.mxu0 0
    %1804 = vmatpush1.bf16.msra.mxu0 %v1780
    %1805 = vmatprep.subr.bf16.mxu0 0
    %1806 = vmatpush1.bf16.msra.mxu0 %v1779
    %1807 = vmatprep.subr.bf16.mxu0 0
    %1808 = vmatpush1.bf16.msra.mxu0 %v1778
    %1809 = vmatprep.subr.bf16.mxu0 0
    %1810 = vmatpush1.bf16.msra.mxu0 %v1777
    %1811 = vmatprep.subr.bf16.mxu0 0
    %1812 = vmatpush1.bf16.msra.mxu0 %v1776
    %1813 = vmatprep.subr.bf16.mxu0 0
    %1814 = vmatpush1.bf16.msra.mxu0 %v1775
    %1815 = vmatprep.subr.bf16.mxu0 0
    %1816 = vmatpush2.bf16.msra.mxu0 %v1790
    %1817 = vmatprep.subr.bf16.mxu0 0
    %1818 = vmatpush2.bf16.msra.mxu0 %v1789
    %1819 = vmatprep.subr.bf16.mxu0 0
    %1820 = vmatpush2.bf16.msra.mxu0 %v1788
    %1821 = vmatprep.subr.bf16.mxu0 0
    %1822 = vmatpush2.bf16.msra.mxu0 %v1787
    %1823 = vmatprep.subr.bf16.mxu0 0
    %1824 = vmatpush2.bf16.msra.mxu0 %v1786
    %1825 = vmatprep.subr.bf16.mxu0 0
    %1826 = vmatpush2.bf16.msra.mxu0 %v1785
    %1827 = vmatprep.subr.bf16.mxu0 0
    %1828 = vmatpush2.bf16.msra.mxu0 %v1784
    %1829 = vmatprep.subr.bf16.mxu0 0
    %1830 = vmatpush2.bf16.msra.mxu0 %v1783
    %1831 = vmatprep.mubr.bf16.mxu0 %v1796
    %1832 = vmatmul.mubr.bf16.gmra.mxu0 %v1795
    %v1833 = vpop.f32.mrf.mxu0
    %v1834 = vadd.f32 0.0, %v1833
    %v1835 = vpop.f32.mrf.mxu0
    %v1836 = vpop.f32.mrf.mxu0
    %v1837 = vpop.f32.mrf.mxu0
    %1838 = vdwg.mxu0
    %v1839 = vld [vmem:[#allocation12] sm:$0xff]
    %v1840 = vld [vmem:[#allocation12 + $0x8] sm:$0xff]
    %v1841 = vld [vmem:[#allocation12 + $0x10] sm:$0xff]
    %v1842 = vld [vmem:[#allocation12 + $0x18] sm:$0xff]
    %v1843 = vld [vmem:[#allocation12 + $0x20] sm:$0xff]
    %v1844 = vld [vmem:[#allocation12 + $0x28] sm:$0xff]
    %v1845 = vld [vmem:[#allocation12 + $0x30] sm:$0xff]
    %v1846 = vld [vmem:[#allocation12 + $0x38] sm:$0xff]
    %v1847 = vld [vmem:[#allocation12 + $0x40] sm:$0xff]
    %v1848 = vld [vmem:[#allocation12 + $0x48] sm:$0xff]
    %v1849 = vld [vmem:[#allocation12 + $0x50] sm:$0xff]
    %v1850 = vld [vmem:[#allocation12 + $0x58] sm:$0xff]
    %v1851 = vld [vmem:[#allocation12 + $0x60] sm:$0xff]
    %v1852 = vld [vmem:[#allocation12 + $0x68] sm:$0xff]
    %v1853 = vld [vmem:[#allocation12 + $0x70] sm:$0xff]
    %v1854 = vld [vmem:[#allocation12 + $0x78] sm:$0xff]
    %v1855 = vld [vmem:[%s10] sm:$0x1]
    %v1857 = vlaneseq
    %v1858 = vshrl.u32 %v1857, 7
    %v1859 = vsub.s32 0, %v1858
    %v1860 = vrot.slane %v1855, %v1859
    %1862 = vmatprep.subr.mxu0 0.0
    %1863 = vmatpush1.msra.mxu0 %v1854
    %1864 = vmatprep.subr.mxu0 0.0
    %1865 = vmatpush1.msra.mxu0 %v1853
    %1866 = vmatprep.subr.mxu0 0.0
    %1867 = vmatpush1.msra.mxu0 %v1852
    %1868 = vmatprep.subr.mxu0 0.0
    %1869 = vmatpush1.msra.mxu0 %v1851
    %1870 = vmatprep.subr.mxu0 0.0
    %1871 = vmatpush1.msra.mxu0 %v1850
    %1872 = vmatprep.subr.mxu0 0.0
    %1873 = vmatpush1.msra.mxu0 %v1849
    %1874 = vmatprep.subr.mxu0 0.0
    %1875 = vmatpush1.msra.mxu0 %v1848
    %1876 = vmatprep.subr.mxu0 0.0
    %1877 = vmatpush1.msra.mxu0 %v1847
    %1878 = vmatprep.subr.mxu0 0.0
    %1879 = vmatpush1.msra.mxu0 %v1846
    %1880 = vmatprep.subr.mxu0 0.0
    %1881 = vmatpush1.msra.mxu0 %v1845
    %1882 = vmatprep.subr.mxu0 0.0
    %1883 = vmatpush1.msra.mxu0 %v1844
    %1884 = vmatprep.subr.mxu0 0.0
    %1885 = vmatpush1.msra.mxu0 %v1843
    %1886 = vmatprep.subr.mxu0 0.0
    %1887 = vmatpush1.msra.mxu0 %v1842
    %1888 = vmatprep.subr.mxu0 0.0
    %1889 = vmatpush1.msra.mxu0 %v1841
    %1890 = vmatprep.subr.mxu0 0.0
    %1891 = vmatpush1.msra.mxu0 %v1840
    %1892 = vmatprep.subr.mxu0 0.0
    %1893 = vmatpush1.msra.mxu0 %v1839
    %1894 = vmatprep.subr.mxu0 0.0
    %1895 = vmatpush2.msra.mxu0 0.0
    %1896 = vmatprep.subr.mxu0 0.0
    %1897 = vmatpush2.msra.mxu0 0.0
    %1898 = vmatprep.subr.mxu0 0.0
    %1899 = vmatpush2.msra.mxu0 0.0
    %1900 = vmatprep.subr.mxu0 0.0
    %1901 = vmatpush2.msra.mxu0 0.0
    %1902 = vmatprep.subr.mxu0 0.0
    %1903 = vmatpush2.msra.mxu0 0.0
    %1904 = vmatprep.subr.mxu0 0.0
    %1905 = vmatpush2.msra.mxu0 0.0
    %1906 = vmatprep.subr.mxu0 0.0
    %1907 = vmatpush2.msra.mxu0 0.0
    %1908 = vmatprep.subr.mxu0 0.0
    %1909 = vmatpush2.msra.mxu0 0.0
    %1910 = vmatprep.subr.mxu0 0.0
    %1911 = vmatpush2.msra.mxu0 0.0
    %1912 = vmatprep.subr.mxu0 0.0
    %1913 = vmatpush2.msra.mxu0 0.0
    %1914 = vmatprep.subr.mxu0 0.0
    %1915 = vmatpush2.msra.mxu0 0.0
    %1916 = vmatprep.subr.mxu0 0.0
    %1917 = vmatpush2.msra.mxu0 0.0
    %1918 = vmatprep.subr.mxu0 0.0
    %1919 = vmatpush2.msra.mxu0 0.0
    %1920 = vmatprep.subr.mxu0 0.0
    %1921 = vmatpush2.msra.mxu0 0.0
    %1922 = vmatprep.subr.mxu0 0.0
    %1923 = vmatpush2.msra.mxu0 0.0
    %1924 = vmatprep.subr.mxu0 0.0
    %1925 = vmatpush2.msra.mxu0 0.0
    %1926 = vmatprep.mubr.f32.mxu0 0.0
    %1927 = vmatmul.mubr.f32.gmra.mxu0 %v1834
    %v1928 = vpop.f32.mrf.mxu0
    %v1929 = vadd.f32 %v1860, %v1928
    %v1930 = vpop.f32.mrf.mxu0
    %1931 = vdwg.mxu0
    %1932 = vst [vmem:[%s11] sm:$0xff] %v1929
    // Predicated region
    $region74: #{_forward_impl.1} parent=1 // pred_check
      _
    $region75: #{_forward_impl.1} parent=1 // pred_check_branch
      %1934 = sbr.rel (0) target = $region77
    $region76: #{_forward_impl.1} parent=1 // pred_region
      _
    $region77: #{_forward_impl.1} parent=1 // pred_fallthru
      _
    // Predicated region
    $region78: #{_forward_impl.1} parent=1 // pred_check
      _
    $region79: #{_forward_impl.1} parent=1 // pred_check_branch
      %1936 = sbr.rel (0) target = $region81
    $region80: #{_forward_impl.1} parent=1 // pred_region
      _
    $region81: #{_forward_impl.1} parent=1 // pred_fallthru
      _
    %1937 = vsyncpa [#allocation3], 1
    %1938 = vsyncpa [#allocation5], 1
    %1939 = vsyncpa [#allocation8], 1
    %1940 = vsyncpa [#allocation11], 1

</llo_original>
